<compile_context>
chip_gen: v7x
topology: tpu7x:2x2x1
jax: 0.10.0
libtpu: 0.0.40
codegen_flags: <defaults>
</compile_context>

<pallas_src>
import functools
import math

import jax
import jax.numpy as jnp
from jax import lax
from jax.experimental import pallas as pl
from jax.experimental.pallas import tpu as pltpu


# ----------------------------------------------------------------------------
# Kernel helpers
# ----------------------------------------------------------------------------
def _layer_norm(x, gamma, beta, eps):
    mu = jnp.mean(x, axis=-1, keepdims=True)
    xc = x - mu
    var = jnp.mean(xc * xc, axis=-1, keepdims=True)
    return xc * lax.rsqrt(var + eps) * gamma + beta        # rsqrt -> EUP slot


# ----------------------------------------------------------------------------
# Fused encoder kernel: one grid step = one layer applied to one batch tile.
# The residual stream lives in o_ref (output block revisited across layers).
# ----------------------------------------------------------------------------
def _encoder_layer_kernel(x_ref, ctx_ref,
                          wq_ref, wkv_ref, wo_ref, bo_ref,
                          ln1g_ref, ln1b_ref,
                          w1_ref, b1_ref, w2_ref, b2_ref,
                          ln2g_ref, ln2b_ref,
                          o_ref, *, num_heads, eps, mxu_dtype):
    layer = pl.program_id(1)

    # Layer 0 seeds the residual-stream carry with the target (query) block.
    @pl.when(layer == 0)
    def _():
        o_ref[...] = x_ref[...]

    bt, tq, e = o_ref.shape
    tk = ctx_ref.shape[1]
    dh = e // num_heads

    x = o_ref[...].astype(jnp.float32).reshape(bt * tq, e)    # residual stream
    ctx = ctx_ref[...].astype(jnp.float32).reshape(bt * tk, e)

    # --- projections: big (bt*T, E) x (E, N) MXU matmuls, bf16 operands -------
    q = jnp.dot(x.astype(mxu_dtype), wq_ref[...],             # scale folded in Wq
                preferred_element_type=jnp.float32)
    kv = jnp.dot(ctx.astype(mxu_dtype), wkv_ref[...],         # fused [K | V], N=2E
                 preferred_element_type=jnp.float32)
    qb = q.astype(mxu_dtype)
    kb = kv[:, :e].astype(mxu_dtype)                          # lane-aligned splits
    vb = kv[:, e:].astype(mxu_dtype)

    # --- per-head attention, batched over bt; output proj distributed per head
    attn = jnp.zeros((bt * tq, e), jnp.float32)
    for h in range(num_heads):                                # small, unrolled
        sl = slice(h * dh, (h + 1) * dh)
        qh = qb[:, sl].reshape(bt, tq, dh)
        kh = kb[:, sl].reshape(bt, tk, dh)
        vh = vb[:, sl].reshape(bt, tk, dh)
        s = jnp.einsum("bqd,bkd->bqk", qh, kh,
                       preferred_element_type=jnp.float32)    # f32 scores
        s = s - jnp.max(s, axis=-1, keepdims=True)
        p = jnp.exp(s)
        p = p * pl.reciprocal(jnp.sum(p, axis=-1, keepdims=True), approx=True)
        oh = jnp.einsum("bqk,bkd->bqd", p.astype(mxu_dtype), vh,
                        preferred_element_type=jnp.float32)
        # Sublane slice of Wo; f32 accumulate -> no concatenate of heads.
        attn = attn + jnp.dot(oh.reshape(bt * tq, dh).astype(mxu_dtype),
                              wo_ref[sl, :],
                              preferred_element_type=jnp.float32)
    attn = attn + bo_ref[...]

    # --- residual + attn LayerNorm (f32 elementwise) ---------------------------
    h1 = _layer_norm(x + attn, ln1g_ref[...], ln1b_ref[...], eps)

    # --- FFN: Linear -> ReLU -> Linear, residual, LayerNorm --------------------
    f = jnp.dot(h1.astype(mxu_dtype), w1_ref[...],
                preferred_element_type=jnp.float32) + b1_ref[...]
    f = jnp.maximum(f, 0.0)
    f = jnp.dot(f.astype(mxu_dtype), w2_ref[...],
                preferred_element_type=jnp.float32) + b2_ref[...]

    out = _layer_norm(h1 + f, ln2g_ref[...], ln2b_ref[...], eps)
    o_ref[...] = out.reshape(bt, tq, e).astype(o_ref.dtype)


# ----------------------------------------------------------------------------
# Parameter packing: stack layers on a leading L axis, fuse K|V, fold the
# attention scale into Wq, cast matmul weights to the MXU dtype (bf16).
# ----------------------------------------------------------------------------
def pack_encoder_params(layer_params, num_heads, mxu_dtype=jnp.bfloat16):
    e = layer_params[0]["wq"].shape[0]
    dh = e // num_heads
    scale = 1.0 / math.sqrt(dh)
    stack = lambda name: jnp.stack([p[name] for p in layer_params])
    return dict(
        wq=jnp.stack([p["wq"] * scale for p in layer_params]).astype(mxu_dtype),
        wkv=jnp.stack([jnp.concatenate([p["wk"], p["wv"]], axis=-1)
                       for p in layer_params]).astype(mxu_dtype),
        wo=stack("wo").astype(mxu_dtype),
        bo=stack("bo").astype(jnp.float32),
        ln1_g=stack("ln1_g").astype(jnp.float32),
        ln1_b=stack("ln1_b").astype(jnp.float32),
        w1=stack("w1").astype(mxu_dtype),
        b1=stack("b1").astype(jnp.float32),
        w2=stack("w2").astype(mxu_dtype),
        b2=stack("b2").astype(jnp.float32),
        ln2_g=stack("ln2_g").astype(jnp.float32),
        ln2_b=stack("ln2_b").astype(jnp.float32),
    )


# ----------------------------------------------------------------------------
# Wrapper: single pallas_call for the whole encoder.
# ----------------------------------------------------------------------------
def cross_transformer_encoder_pallas(target, history, layer_params, *,
                                     num_heads, eps=1e-5, block_batch=8,
                                     mxu_dtype=jnp.bfloat16):
    """CrossTransformerEncoder.forward (USE_self_attn=False, mask ignored)."""
    b, tq, e = target.shape
    bh, tk, ec = history.shape
    assert bh == b and ec == e
    assert e % num_heads == 0, "embedding_dim must be divisible by num_heads"
    # Lane-dense layout is best when e is a multiple of 128 (true here).

    packed = pack_encoder_params(layer_params, num_heads, mxu_dtype)
    num_layers = packed["wq"].shape[0]
    ff = packed["w1"].shape[-1]

    # Block several batch rows per grid step (amortizes step overhead, feeds
    # the MXU with M = bt*tq rows per matmul).
    bt = min(block_batch, b)
    while b % bt:
        bt -= 1

    kernel = functools.partial(_encoder_layer_kernel, num_heads=num_heads,
                               eps=eps, mxu_dtype=mxu_dtype)

    def wspec(trailing):
        # Stacked per-layer weight: stream one layer's slab per layer step.
        return pl.BlockSpec((None,) + tuple(trailing), lambda i, l: (l, 0, 0))

    def act_spec(t):
        # Activations: constant across the layer axis -> resident in VMEM.
        return pl.BlockSpec((bt, t, e), lambda i, l: (i, 0, 0))

    # TODO(synk): for very large E/FF on v7x (64 MiB VMEM) the per-layer weight
    # slab should be K-tiled (extra grid axis) or use pl.Buffered(1); not
    # needed at these sizes (~200 KiB of bf16 weights per layer).
    return pl.pallas_call(
        kernel,
        out_shape=jax.ShapeDtypeStruct((b, tq, e), target.dtype),
        grid=(b // bt, num_layers),
        in_specs=[
            act_spec(tq),                     # target (read at layer 0 only)
            act_spec(tk),                     # history / context
            wspec((e, e)),                    # Wq (scale folded in)
            wspec((e, 2 * e)),                # fused [Wk | Wv]
            wspec((e, e)),                    # Wo
            wspec((1, e)),                    # bo
            wspec((1, e)), wspec((1, e)),     # attn LN gamma / beta
            wspec((e, ff)), wspec((1, ff)),   # FFN W1, b1
            wspec((ff, e)), wspec((1, e)),    # FFN W2, b2
            wspec((1, e)), wspec((1, e)),     # ffn LN gamma / beta
        ],
        out_specs=pl.BlockSpec((bt, tq, e), lambda i, l: (i, 0, 0)),
        compiler_params=pltpu.CompilerParams(
            dimension_semantics=("parallel", "arbitrary"),   # batch x layers
            vmem_limit_bytes=32 * 1024 * 1024,
        ),
    )(target, history,
      packed["wq"], packed["wkv"], packed["wo"], packed["bo"],
      packed["ln1_g"], packed["ln1_b"],
      packed["w1"], packed["b1"], packed["w2"], packed["b2"],
      packed["ln2_g"], packed["ln2_b"])


# ----------------------------------------------------------------------------
# Parameter construction (matches nn.Linear / nn.LayerNorm fresh init layout)
# ----------------------------------------------------------------------------
def init_layer_params(key, embedding_dim, ff_dim):
    ks = jax.random.split(key, 6)

    def lin(k, n_in, n_out, bias):
        lim = 1.0 / math.sqrt(n_in)
        kw, kb = jax.random.split(k)
        w = jax.random.uniform(kw, (n_in, n_out), jnp.float32, -lim, lim)
        bvec = (jax.random.uniform(kb, (1, n_out), jnp.float32, -lim, lim)
                if bias else None)
        return w, bvec

    wq, _ = lin(ks[0], embedding_dim, embedding_dim, False)
    wk, _ = lin(ks[1], embedding_dim, embedding_dim, False)
    wv, _ = lin(ks[2], embedding_dim, embedding_dim, False)
    wo, bo = lin(ks[3], embedding_dim, embedding_dim, True)
    w1, b1 = lin(ks[4], embedding_dim, ff_dim, True)
    w2, b2 = lin(ks[5], ff_dim, embedding_dim, True)
    ones = jnp.ones((1, embedding_dim), jnp.float32)
    zeros = jnp.zeros((1, embedding_dim), jnp.float32)
    return dict(wq=wq, wk=wk, wv=wv, wo=wo, bo=bo,
                ln1_g=ones, ln1_b=zeros,
                w1=w1, b1=b1, w2=w2, b2=b2,
                ln2_g=ones, ln2_b=zeros)


# ----------------------------------------------------------------------------
# Pure-JAX f32 reference (mirrors the PyTorch forward semantics)
# ----------------------------------------------------------------------------
def _ref_layer_norm(x, g, b, eps=1e-5):
    mu = jnp.mean(x, axis=-1, keepdims=True)
    var = jnp.mean((x - mu) ** 2, axis=-1, keepdims=True)
    return (x - mu) * lax.rsqrt(var + eps) * g + b


def _ref_layer(target, history, p, num_heads, eps=1e-5):
    hp = jax.lax.Precision.HIGHEST
    b, tq, e = target.shape
    tk = history.shape[1]
    dh = e // num_heads
    scale = 1.0 / math.sqrt(dh)
    q = jnp.einsum("bte,ef->btf", target, p["wq"], precision=hp)
    k = jnp.einsum("bte,ef->btf", history, p["wk"], precision=hp)
    v = jnp.einsum("bte,ef->btf", history, p["wv"], precision=hp)
    qh = q.reshape(b, tq, num_heads, dh).transpose(0, 2, 1, 3)
    kh = k.reshape(b, tk, num_heads, dh).transpose(0, 2, 1, 3)
    vh = v.reshape(b, tk, num_heads, dh).transpose(0, 2, 1, 3)
    s = jnp.einsum("bhqd,bhkd->bhqk", qh, kh, precision=hp) * scale
    pr = jax.nn.softmax(s, axis=-1)
    o = jnp.einsum("bhqk,bhkd->bhqd", pr, vh, precision=hp)
    o = o.transpose(0, 2, 1, 3).reshape(b, tq, e)
    attn = jnp.einsum("bte,ef->btf", o, p["wo"], precision=hp) + p["bo"]
    h1 = _ref_layer_norm(target + attn, p["ln1_g"], p["ln1_b"], eps)
    f = jax.nn.relu(jnp.einsum("bte,ef->btf", h1, p["w1"], precision=hp) + p["b1"])
    f = jnp.einsum("btf,fe->bte", f, p["w2"], precision=hp) + p["b2"]
    return _ref_layer_norm(h1 + f, p["ln2_g"], p["ln2_b"], eps)


def cross_transformer_encoder_ref(target, history, layer_params, num_heads):
    out = target
    for p in layer_params:
        out = _ref_layer(out, history, p, num_heads)
    return out


# ----------------------------------------------------------------------------
# Demo
# ----------------------------------------------------------------------------
if __name__ == "__main__":
    key = jax.random.PRNGKey(0)
    B, TQ, TK = 2, 8, 16            # batch, target seq, history seq
    EMB, HEADS, FF, LAYERS = 128, 4, 128, 2

    k_t, k_h, k_p = jax.random.split(key, 3)
    target_item = jax.random.normal(k_t, (B, TQ, EMB), jnp.float32)
    history_sequence = jax.random.normal(k_h, (B, TK, EMB), jnp.float32)
    layer_params = [init_layer_params(k, EMB, FF)
                    for k in jax.random.split(k_p, LAYERS)]

    y = cross_transformer_encoder_pallas(target_item, history_sequence,
                                         layer_params, num_heads=HEADS)
    y = jax.block_until_ready(y)

    y_ref = cross_transformer_encoder_ref(target_item, history_sequence,
                                          layer_params, HEADS)
    assert y.shape == (B, TQ, EMB) and y.dtype == target_item.dtype
    assert bool(jnp.all(jnp.isfinite(y)))
    # bf16 MXU operands + approx reciprocal vs an f32 reference: stays well
    # inside this tolerance for LayerNorm-bounded activations.
    max_err = float(jnp.max(jnp.abs(y - y_ref)))
    assert max_err < 5e-2, f"max abs err {max_err}"

    print("KERNEL_OK")
</pallas_src>

<mosaic_0001>
module attributes {stable_mosaic.version = 11 : i64} {
  func.func @_encoder_layer_kernel(%arg0: i32, %arg1: i32, %arg2: memref<2x8x128xf32, #tpu.memory_space<vmem>>, %arg3: memref<2x16x128xf32, #tpu.memory_space<vmem>>, %arg4: memref<1x128x128xbf16, #tpu.memory_space<vmem>>, %arg5: memref<1x128x256xbf16, #tpu.memory_space<vmem>>, %arg6: memref<1x128x128xbf16, #tpu.memory_space<vmem>>, %arg7: memref<1x1x128xf32, #tpu.memory_space<vmem>>, %arg8: memref<1x1x128xf32, #tpu.memory_space<vmem>>, %arg9: memref<1x1x128xf32, #tpu.memory_space<vmem>>, %arg10: memref<1x128x128xbf16, #tpu.memory_space<vmem>>, %arg11: memref<1x1x128xf32, #tpu.memory_space<vmem>>, %arg12: memref<1x128x128xbf16, #tpu.memory_space<vmem>>, %arg13: memref<1x1x128xf32, #tpu.memory_space<vmem>>, %arg14: memref<1x1x128xf32, #tpu.memory_space<vmem>>, %arg15: memref<1x1x128xf32, #tpu.memory_space<vmem>>, %arg16: memref<2x8x128xf32, #tpu.memory_space<vmem>>) attributes {dimension_semantics = [#tpu.dimension_semantics<parallel>, #tpu.dimension_semantics<arbitrary>], iteration_bounds = array<i64: 1, 2>, scalar_prefetch = 0 : i64, scratch_operands = 0 : i64, tpu.core_type = #tpu.core_type<tc>, window_params = [{transform_indices = @transform_0, window_bounds = array<i64: 2, 8, 128>}, {transform_indices = @transform_1, window_bounds = array<i64: 2, 16, 128>}, {transform_indices = @transform_2, window_bounds = array<i64: 1, 128, 128>}, {transform_indices = @transform_3, window_bounds = array<i64: 1, 128, 256>}, {transform_indices = @transform_4, window_bounds = array<i64: 1, 128, 128>}, {transform_indices = @transform_5, window_bounds = array<i64: 1, 1, 128>}, {transform_indices = @transform_6, window_bounds = array<i64: 1, 1, 128>}, {transform_indices = @transform_7, window_bounds = array<i64: 1, 1, 128>}, {transform_indices = @transform_8, window_bounds = array<i64: 1, 128, 128>}, {transform_indices = @transform_9, window_bounds = array<i64: 1, 1, 128>}, {transform_indices = @transform_10, window_bounds = array<i64: 1, 128, 128>}, {transform_indices = @transform_11, window_bounds = array<i64: 1, 1, 128>}, {transform_indices = @transform_12, window_bounds = array<i64: 1, 1, 128>}, {transform_indices = @transform_13, window_bounds = array<i64: 1, 1, 128>}, {transform_indices = @transform_14, window_bounds = array<i64: 2, 8, 128>}]} {
    %c0_i32 = arith.constant 0 : i32
    %0 = arith.cmpi eq, %arg1, %c0_i32 : i32
    %1 = arith.extui %0 : i1 to i32
    %c0_i32_0 = arith.constant 0 : i32
    %2 = arith.cmpi ne, %1, %c0_i32_0 : i32
    scf.if %2 {
      %c0_86 = arith.constant 0 : index
      %c0_87 = arith.constant 0 : index
      %c0_88 = arith.constant 0 : index
      %195 = vector.load %arg2[%c0_86, %c0_87, %c0_88] : memref<2x8x128xf32, #tpu.memory_space<vmem>>, vector<2x8x128xf32>
      %c0_89 = arith.constant 0 : index
      %c0_90 = arith.constant 0 : index
      %c0_91 = arith.constant 0 : index
      %196 = vector.load %arg16[%c0_89, %c0_90, %c0_91] : memref<2x8x128xf32, #tpu.memory_space<vmem>>, vector<2x8x128xf32>
      tpu.vector_store %arg16[%c0_89, %c0_90, %c0_91], %195 {strides = array<i32>} : memref<2x8x128xf32, #tpu.memory_space<vmem>>, vector<2x8x128xf32>,
    } else {
    }
    %c0 = arith.constant 0 : index
    %c0_1 = arith.constant 0 : index
    %c0_2 = arith.constant 0 : index
    %3 = vector.load %arg16[%c0, %c0_1, %c0_2] : memref<2x8x128xf32, #tpu.memory_space<vmem>>, vector<2x8x128xf32>
    %4 = vector.shape_cast %3 : vector<2x8x128xf32> to vector<16x128xf32>
    %c0_3 = arith.constant 0 : index
    %c0_4 = arith.constant 0 : index
    %c0_5 = arith.constant 0 : index
    %5 = vector.load %arg3[%c0_3, %c0_4, %c0_5] : memref<2x16x128xf32, #tpu.memory_space<vmem>>, vector<2x16x128xf32>
    %6 = vector.shape_cast %5 : vector<2x16x128xf32> to vector<32x128xf32>
    %7 = arith.truncf %4 : vector<16x128xf32> to vector<16x128xbf16>
    %c0_6 = arith.constant 0 : index
    %c0_7 = arith.constant 0 : index
    %c0_8 = arith.constant 0 : index
    %8 = vector.load %arg4[%c0_6, %c0_7, %c0_8] : memref<1x128x128xbf16, #tpu.memory_space<vmem>>, vector<1x128x128xbf16>
    %9 = vector.shape_cast %8 : vector<1x128x128xbf16> to vector<128x128xbf16>
    %cst = arith.constant dense<0.000000e+00> : vector<16x128xf32>
    %10 = tpu.matmul %7, %9, %cst {dimension_numbers = #tpu.dot_dimension_numbers<[1], [0], [0], [1], [0, 0, 1, 1], [], []>} : vector<16x128xbf16>, vector<128x128xbf16>, vector<16x128xf32> -> vector<16x128xf32>
    %11 = arith.truncf %6 : vector<32x128xf32> to vector<32x128xbf16>
    %c0_9 = arith.constant 0 : index
    %c0_10 = arith.constant 0 : index
    %c0_11 = arith.constant 0 : index
    %12 = vector.load %arg5[%c0_9, %c0_10, %c0_11] : memref<1x128x256xbf16, #tpu.memory_space<vmem>>, vector<1x128x256xbf16>
    %13 = vector.shape_cast %12 : vector<1x128x256xbf16> to vector<128x256xbf16>
    %cst_12 = arith.constant dense<0.000000e+00> : vector<32x256xf32>
    %14 = tpu.matmul %11, %13, %cst_12 {dimension_numbers = #tpu.dot_dimension_numbers<[1], [0], [0], [1], [0, 0, 1, 1], [], []>} : vector<32x128xbf16>, vector<128x256xbf16>, vector<32x256xf32> -> vector<32x256xf32>
    %15 = arith.truncf %10 : vector<16x128xf32> to vector<16x128xbf16>
    %16 = vector.extract_strided_slice %14 {offsets = [0, 0], sizes = [32, 128], strides = [1, 1]} : vector<32x256xf32> to vector<32x128xf32>
    %17 = arith.truncf %16 : vector<32x128xf32> to vector<32x128xbf16>
    %18 = vector.extract_strided_slice %14 {offsets = [0, 128], sizes = [32, 128], strides = [1, 1]} : vector<32x256xf32> to vector<32x128xf32>
    %19 = arith.truncf %18 : vector<32x128xf32> to vector<32x128xbf16>
    %cst_13 = arith.constant 0.000000e+00 : f32
    %20 = vector.broadcast %cst_13 : f32 to vector<16x128xf32>
    %21 = vector.extract_strided_slice %15 {offsets = [0, 0], sizes = [16, 32], strides = [1, 1]} : vector<16x128xbf16> to vector<16x32xbf16>
    %22 = vector.shape_cast %21 : vector<16x32xbf16> to vector<2x8x32xbf16>
    %23 = vector.extract_strided_slice %17 {offsets = [0, 0], sizes = [32, 32], strides = [1, 1]} : vector<32x128xbf16> to vector<32x32xbf16>
    %24 = vector.shape_cast %23 : vector<32x32xbf16> to vector<2x16x32xbf16>
    %25 = vector.extract_strided_slice %19 {offsets = [0, 0], sizes = [32, 32], strides = [1, 1]} : vector<32x128xbf16> to vector<32x32xbf16>
    %26 = vector.shape_cast %25 : vector<32x32xbf16> to vector<2x16x32xbf16>
    "tpu.trace_start"() <{level = 10 : i32, message = "bqd,bkd->bqk"}> : () -> ()
    %cst_14 = arith.constant dense<0.000000e+00> : vector<2x8x16xf32>
    %27 = tpu.matmul %22, %24, %cst_14 {dimension_numbers = #tpu.dot_dimension_numbers<[2], [2], [1], [1], [0, 0, 0, 1, 1, 1], [0], [0]>} : vector<2x8x32xbf16>, vector<2x16x32xbf16>, vector<2x8x16xf32> -> vector<2x8x16xf32>
    "tpu.trace_stop"() : () -> ()
    %cst_15 = arith.constant dense<0xFF800000> : vector<2x8xf32>
    %28 = vector.multi_reduction <maximumf>, %27, %cst_15 [2] : vector<2x8x16xf32> to vector<2x8xf32>
    %29 = vector.shape_cast %28 : vector<2x8xf32> to vector<2x8x1xf32>
    %30 = vector.broadcast %29 : vector<2x8x1xf32> to vector<2x8x16xf32>
    %31 = arith.subf %27, %30 : vector<2x8x16xf32>
    %32 = math.exp %31 : vector<2x8x16xf32>
    %cst_16 = arith.constant dense<0.000000e+00> : vector<2x8xf32>
    %33 = vector.multi_reduction <add>, %32, %cst_16 [2] : vector<2x8x16xf32> to vector<2x8xf32>
    %34 = vector.shape_cast %33 : vector<2x8xf32> to vector<2x8x1xf32>
    %35 = tpu.reciprocal %34 {approx = true} : vector<2x8x1xf32> -> vector<2x8x1xf32>
    %36 = vector.broadcast %35 : vector<2x8x1xf32> to vector<2x8x16xf32>
    %37 = arith.mulf %32, %36 : vector<2x8x16xf32>
    %38 = arith.truncf %37 : vector<2x8x16xf32> to vector<2x8x16xbf16>
    "tpu.trace_start"() <{level = 10 : i32, message = "bqk,bkd->bqd"}> : () -> ()
    %cst_17 = arith.constant dense<0.000000e+00> : vector<2x8x32xf32>
    %39 = tpu.matmul %38, %26, %cst_17 {dimension_numbers = #tpu.dot_dimension_numbers<[2], [1], [1], [2], [0, 0, 0, 1, 1, 2], [0], [0]>} : vector<2x8x16xbf16>, vector<2x16x32xbf16>, vector<2x8x32xf32> -> vector<2x8x32xf32>
    "tpu.trace_stop"() : () -> ()
    %40 = vector.shape_cast %39 : vector<2x8x32xf32> to vector<16x32xf32>
    %41 = arith.truncf %40 : vector<16x32xf32> to vector<16x32xbf16>
    %c0_18 = arith.constant 0 : index
    %c0_19 = arith.constant 0 : index
    %c0_20 = arith.constant 0 : index
    %42 = vector.load %arg6[%c0_18, %c0_19, %c0_20] : memref<1x128x128xbf16, #tpu.memory_space<vmem>>, vector<1x32x128xbf16>
    %43 = vector.shape_cast %42 : vector<1x32x128xbf16> to vector<32x128xbf16>
    %cst_21 = arith.constant dense<0.000000e+00> : vector<16x128xf32>
    %44 = tpu.matmul %41, %43, %cst_21 {dimension_numbers = #tpu.dot_dimension_numbers<[1], [0], [0], [1], [0, 0, 1, 1], [], []>} : vector<16x32xbf16>, vector<32x128xbf16>, vector<16x128xf32> -> vector<16x128xf32>
    %45 = arith.addf %20, %44 : vector<16x128xf32>
    %46 = vector.extract_strided_slice %15 {offsets = [0, 32], sizes = [16, 32], strides = [1, 1]} : vector<16x128xbf16> to vector<16x32xbf16>
    %47 = vector.shape_cast %46 : vector<16x32xbf16> to vector<2x8x32xbf16>
    %48 = vector.extract_strided_slice %17 {offsets = [0, 32], sizes = [32, 32], strides = [1, 1]} : vector<32x128xbf16> to vector<32x32xbf16>
    %49 = vector.shape_cast %48 : vector<32x32xbf16> to vector<2x16x32xbf16>
    %50 = vector.extract_strided_slice %19 {offsets = [0, 32], sizes = [32, 32], strides = [1, 1]} : vector<32x128xbf16> to vector<32x32xbf16>
    %51 = vector.shape_cast %50 : vector<32x32xbf16> to vector<2x16x32xbf16>
    "tpu.trace_start"() <{level = 10 : i32, message = "bqd,bkd->bqk"}> : () -> ()
    %cst_22 = arith.constant dense<0.000000e+00> : vector<2x8x16xf32>
    %52 = tpu.matmul %47, %49, %cst_22 {dimension_numbers = #tpu.dot_dimension_numbers<[2], [2], [1], [1], [0, 0, 0, 1, 1, 1], [0], [0]>} : vector<2x8x32xbf16>, vector<2x16x32xbf16>, vector<2x8x16xf32> -> vector<2x8x16xf32>
    "tpu.trace_stop"() : () -> ()
    %cst_23 = arith.constant dense<0xFF800000> : vector<2x8xf32>
    %53 = vector.multi_reduction <maximumf>, %52, %cst_23 [2] : vector<2x8x16xf32> to vector<2x8xf32>
    %54 = vector.shape_cast %53 : vector<2x8xf32> to vector<2x8x1xf32>
    %55 = vector.broadcast %54 : vector<2x8x1xf32> to vector<2x8x16xf32>
    %56 = arith.subf %52, %55 : vector<2x8x16xf32>
    %57 = math.exp %56 : vector<2x8x16xf32>
    %cst_24 = arith.constant dense<0.000000e+00> : vector<2x8xf32>
    %58 = vector.multi_reduction <add>, %57, %cst_24 [2] : vector<2x8x16xf32> to vector<2x8xf32>
    %59 = vector.shape_cast %58 : vector<2x8xf32> to vector<2x8x1xf32>
    %60 = tpu.reciprocal %59 {approx = true} : vector<2x8x1xf32> -> vector<2x8x1xf32>
    %61 = vector.broadcast %60 : vector<2x8x1xf32> to vector<2x8x16xf32>
    %62 = arith.mulf %57, %61 : vector<2x8x16xf32>
    %63 = arith.truncf %62 : vector<2x8x16xf32> to vector<2x8x16xbf16>
    "tpu.trace_start"() <{level = 10 : i32, message = "bqk,bkd->bqd"}> : () -> ()
    %cst_25 = arith.constant dense<0.000000e+00> : vector<2x8x32xf32>
    %64 = tpu.matmul %63, %51, %cst_25 {dimension_numbers = #tpu.dot_dimension_numbers<[2], [1], [1], [2], [0, 0, 0, 1, 1, 2], [0], [0]>} : vector<2x8x16xbf16>, vector<2x16x32xbf16>, vector<2x8x32xf32> -> vector<2x8x32xf32>
    "tpu.trace_stop"() : () -> ()
    %65 = vector.shape_cast %64 : vector<2x8x32xf32> to vector<16x32xf32>
    %66 = arith.truncf %65 : vector<16x32xf32> to vector<16x32xbf16>
    %c0_26 = arith.constant 0 : index
    %c32 = arith.constant 32 : index
    %c0_27 = arith.constant 0 : index
    %67 = vector.load %arg6[%c0_26, %c32, %c0_27] : memref<1x128x128xbf16, #tpu.memory_space<vmem>>, vector<1x32x128xbf16>
    %68 = vector.shape_cast %67 : vector<1x32x128xbf16> to vector<32x128xbf16>
    %cst_28 = arith.constant dense<0.000000e+00> : vector<16x128xf32>
    %69 = tpu.matmul %66, %68, %cst_28 {dimension_numbers = #tpu.dot_dimension_numbers<[1], [0], [0], [1], [0, 0, 1, 1], [], []>} : vector<16x32xbf16>, vector<32x128xbf16>, vector<16x128xf32> -> vector<16x128xf32>
    %70 = arith.addf %45, %69 : vector<16x128xf32>
    %71 = vector.extract_strided_slice %15 {offsets = [0, 64], sizes = [16, 32], strides = [1, 1]} : vector<16x128xbf16> to vector<16x32xbf16>
    %72 = vector.shape_cast %71 : vector<16x32xbf16> to vector<2x8x32xbf16>
    %73 = vector.extract_strided_slice %17 {offsets = [0, 64], sizes = [32, 32], strides = [1, 1]} : vector<32x128xbf16> to vector<32x32xbf16>
    %74 = vector.shape_cast %73 : vector<32x32xbf16> to vector<2x16x32xbf16>
    %75 = vector.extract_strided_slice %19 {offsets = [0, 64], sizes = [32, 32], strides = [1, 1]} : vector<32x128xbf16> to vector<32x32xbf16>
    %76 = vector.shape_cast %75 : vector<32x32xbf16> to vector<2x16x32xbf16>
    "tpu.trace_start"() <{level = 10 : i32, message = "bqd,bkd->bqk"}> : () -> ()
    %cst_29 = arith.constant dense<0.000000e+00> : vector<2x8x16xf32>
    %77 = tpu.matmul %72, %74, %cst_29 {dimension_numbers = #tpu.dot_dimension_numbers<[2], [2], [1], [1], [0, 0, 0, 1, 1, 1], [0], [0]>} : vector<2x8x32xbf16>, vector<2x16x32xbf16>, vector<2x8x16xf32> -> vector<2x8x16xf32>
    "tpu.trace_stop"() : () -> ()
    %cst_30 = arith.constant dense<0xFF800000> : vector<2x8xf32>
    %78 = vector.multi_reduction <maximumf>, %77, %cst_30 [2] : vector<2x8x16xf32> to vector<2x8xf32>
    %79 = vector.shape_cast %78 : vector<2x8xf32> to vector<2x8x1xf32>
    %80 = vector.broadcast %79 : vector<2x8x1xf32> to vector<2x8x16xf32>
    %81 = arith.subf %77, %80 : vector<2x8x16xf32>
    %82 = math.exp %81 : vector<2x8x16xf32>
    %cst_31 = arith.constant dense<0.000000e+00> : vector<2x8xf32>
    %83 = vector.multi_reduction <add>, %82, %cst_31 [2] : vector<2x8x16xf32> to vector<2x8xf32>
    %84 = vector.shape_cast %83 : vector<2x8xf32> to vector<2x8x1xf32>
    %85 = tpu.reciprocal %84 {approx = true} : vector<2x8x1xf32> -> vector<2x8x1xf32>
    %86 = vector.broadcast %85 : vector<2x8x1xf32> to vector<2x8x16xf32>
    %87 = arith.mulf %82, %86 : vector<2x8x16xf32>
    %88 = arith.truncf %87 : vector<2x8x16xf32> to vector<2x8x16xbf16>
    "tpu.trace_start"() <{level = 10 : i32, message = "bqk,bkd->bqd"}> : () -> ()
    %cst_32 = arith.constant dense<0.000000e+00> : vector<2x8x32xf32>
    %89 = tpu.matmul %88, %76, %cst_32 {dimension_numbers = #tpu.dot_dimension_numbers<[2], [1], [1], [2], [0, 0, 0, 1, 1, 2], [0], [0]>} : vector<2x8x16xbf16>, vector<2x16x32xbf16>, vector<2x8x32xf32> -> vector<2x8x32xf32>
    "tpu.trace_stop"() : () -> ()
    %90 = vector.shape_cast %89 : vector<2x8x32xf32> to vector<16x32xf32>
    %91 = arith.truncf %90 : vector<16x32xf32> to vector<16x32xbf16>
    %c0_33 = arith.constant 0 : index
    %c64 = arith.constant 64 : index
    %c0_34 = arith.constant 0 : index
    %92 = vector.load %arg6[%c0_33, %c64, %c0_34] : memref<1x128x128xbf16, #tpu.memory_space<vmem>>, vector<1x32x128xbf16>
    %93 = vector.shape_cast %92 : vector<1x32x128xbf16> to vector<32x128xbf16>
    %cst_35 = arith.constant dense<0.000000e+00> : vector<16x128xf32>
    %94 = tpu.matmul %91, %93, %cst_35 {dimension_numbers = #tpu.dot_dimension_numbers<[1], [0], [0], [1], [0, 0, 1, 1], [], []>} : vector<16x32xbf16>, vector<32x128xbf16>, vector<16x128xf32> -> vector<16x128xf32>
    %95 = arith.addf %70, %94 : vector<16x128xf32>
    %96 = vector.extract_strided_slice %15 {offsets = [0, 96], sizes = [16, 32], strides = [1, 1]} : vector<16x128xbf16> to vector<16x32xbf16>
    %97 = vector.shape_cast %96 : vector<16x32xbf16> to vector<2x8x32xbf16>
    %98 = vector.extract_strided_slice %17 {offsets = [0, 96], sizes = [32, 32], strides = [1, 1]} : vector<32x128xbf16> to vector<32x32xbf16>
    %99 = vector.shape_cast %98 : vector<32x32xbf16> to vector<2x16x32xbf16>
    %100 = vector.extract_strided_slice %19 {offsets = [0, 96], sizes = [32, 32], strides = [1, 1]} : vector<32x128xbf16> to vector<32x32xbf16>
    %101 = vector.shape_cast %100 : vector<32x32xbf16> to vector<2x16x32xbf16>
    "tpu.trace_start"() <{level = 10 : i32, message = "bqd,bkd->bqk"}> : () -> ()
    %cst_36 = arith.constant dense<0.000000e+00> : vector<2x8x16xf32>
    %102 = tpu.matmul %97, %99, %cst_36 {dimension_numbers = #tpu.dot_dimension_numbers<[2], [2], [1], [1], [0, 0, 0, 1, 1, 1], [0], [0]>} : vector<2x8x32xbf16>, vector<2x16x32xbf16>, vector<2x8x16xf32> -> vector<2x8x16xf32>
    "tpu.trace_stop"() : () -> ()
    %cst_37 = arith.constant dense<0xFF800000> : vector<2x8xf32>
    %103 = vector.multi_reduction <maximumf>, %102, %cst_37 [2] : vector<2x8x16xf32> to vector<2x8xf32>
    %104 = vector.shape_cast %103 : vector<2x8xf32> to vector<2x8x1xf32>
    %105 = vector.broadcast %104 : vector<2x8x1xf32> to vector<2x8x16xf32>
    %106 = arith.subf %102, %105 : vector<2x8x16xf32>
    %107 = math.exp %106 : vector<2x8x16xf32>
    %cst_38 = arith.constant dense<0.000000e+00> : vector<2x8xf32>
    %108 = vector.multi_reduction <add>, %107, %cst_38 [2] : vector<2x8x16xf32> to vector<2x8xf32>
    %109 = vector.shape_cast %108 : vector<2x8xf32> to vector<2x8x1xf32>
    %110 = tpu.reciprocal %109 {approx = true} : vector<2x8x1xf32> -> vector<2x8x1xf32>
    %111 = vector.broadcast %110 : vector<2x8x1xf32> to vector<2x8x16xf32>
    %112 = arith.mulf %107, %111 : vector<2x8x16xf32>
    %113 = arith.truncf %112 : vector<2x8x16xf32> to vector<2x8x16xbf16>
    "tpu.trace_start"() <{level = 10 : i32, message = "bqk,bkd->bqd"}> : () -> ()
    %cst_39 = arith.constant dense<0.000000e+00> : vector<2x8x32xf32>
    %114 = tpu.matmul %113, %101, %cst_39 {dimension_numbers = #tpu.dot_dimension_numbers<[2], [1], [1], [2], [0, 0, 0, 1, 1, 2], [0], [0]>} : vector<2x8x16xbf16>, vector<2x16x32xbf16>, vector<2x8x32xf32> -> vector<2x8x32xf32>
    "tpu.trace_stop"() : () -> ()
    %115 = vector.shape_cast %114 : vector<2x8x32xf32> to vector<16x32xf32>
    %116 = arith.truncf %115 : vector<16x32xf32> to vector<16x32xbf16>
    %c0_40 = arith.constant 0 : index
    %c96 = arith.constant 96 : index
    %c0_41 = arith.constant 0 : index
    %117 = vector.load %arg6[%c0_40, %c96, %c0_41] : memref<1x128x128xbf16, #tpu.memory_space<vmem>>, vector<1x32x128xbf16>
    %118 = vector.shape_cast %117 : vector<1x32x128xbf16> to vector<32x128xbf16>
    %cst_42 = arith.constant dense<0.000000e+00> : vector<16x128xf32>
    %119 = tpu.matmul %116, %118, %cst_42 {dimension_numbers = #tpu.dot_dimension_numbers<[1], [0], [0], [1], [0, 0, 1, 1], [], []>} : vector<16x32xbf16>, vector<32x128xbf16>, vector<16x128xf32> -> vector<16x128xf32>
    %120 = arith.addf %95, %119 : vector<16x128xf32>
    %c0_43 = arith.constant 0 : index
    %c0_44 = arith.constant 0 : index
    %c0_45 = arith.constant 0 : index
    %121 = vector.load %arg7[%c0_43, %c0_44, %c0_45] : memref<1x1x128xf32, #tpu.memory_space<vmem>>, vector<1x1x128xf32>
    %122 = vector.shape_cast %121 : vector<1x1x128xf32> to vector<1x128xf32>
    %123 = vector.broadcast %122 : vector<1x128xf32> to vector<16x128xf32>
    %124 = arith.addf %120, %123 : vector<16x128xf32>
    %125 = arith.addf %4, %124 : vector<16x128xf32>
    %c0_46 = arith.constant 0 : index
    %c0_47 = arith.constant 0 : index
    %c0_48 = arith.constant 0 : index
    %126 = vector.load %arg8[%c0_46, %c0_47, %c0_48] : memref<1x1x128xf32, #tpu.memory_space<vmem>>, vector<1x1x128xf32>
    %127 = vector.shape_cast %126 : vector<1x1x128xf32> to vector<1x128xf32>
    %c0_49 = arith.constant 0 : index
    %c0_50 = arith.constant 0 : index
    %c0_51 = arith.constant 0 : index
    %128 = vector.load %arg9[%c0_49, %c0_50, %c0_51] : memref<1x1x128xf32, #tpu.memory_space<vmem>>, vector<1x1x128xf32>
    %129 = vector.shape_cast %128 : vector<1x1x128xf32> to vector<1x128xf32>
    %cst_52 = arith.constant dense<0.000000e+00> : vector<16xf32>
    %130 = vector.multi_reduction <add>, %125, %cst_52 [1] : vector<16x128xf32> to vector<16xf32>
    %131 = vector.shape_cast %130 : vector<16xf32> to vector<16x1xf32>
    %cst_53 = arith.constant 1.280000e+02 : f32
    %132 = vector.broadcast %cst_53 : f32 to vector<16x1xf32>
    %133 = arith.divf %131, %132 : vector<16x1xf32>
    %134 = vector.broadcast %133 : vector<16x1xf32> to vector<16x128xf32>
    %135 = arith.subf %125, %134 : vector<16x128xf32>
    %136 = arith.mulf %135, %135 : vector<16x128xf32>
    %cst_54 = arith.constant dense<0.000000e+00> : vector<16xf32>
    %137 = vector.multi_reduction <add>, %136, %cst_54 [1] : vector<16x128xf32> to vector<16xf32>
    %138 = vector.shape_cast %137 : vector<16xf32> to vector<16x1xf32>
    %cst_55 = arith.constant 1.280000e+02 : f32
    %139 = vector.broadcast %cst_55 : f32 to vector<16x1xf32>
    %140 = arith.divf %138, %139 : vector<16x1xf32>
    %cst_56 = arith.constant 9.99999974E-6 : f32
    %141 = vector.broadcast %cst_56 : f32 to vector<16x1xf32>
    %142 = arith.addf %140, %141 : vector<16x1xf32>
    %143 = math.rsqrt %142 : vector<16x1xf32>
    %144 = vector.broadcast %143 : vector<16x1xf32> to vector<16x128xf32>
    %145 = arith.mulf %135, %144 : vector<16x128xf32>
    %146 = vector.broadcast %127 : vector<1x128xf32> to vector<16x128xf32>
    %147 = arith.mulf %145, %146 : vector<16x128xf32>
    %148 = vector.broadcast %129 : vector<1x128xf32> to vector<16x128xf32>
    %149 = arith.addf %147, %148 : vector<16x128xf32>
    %150 = arith.truncf %149 : vector<16x128xf32> to vector<16x128xbf16>
    %c0_57 = arith.constant 0 : index
    %c0_58 = arith.constant 0 : index
    %c0_59 = arith.constant 0 : index
    %151 = vector.load %arg10[%c0_57, %c0_58, %c0_59] : memref<1x128x128xbf16, #tpu.memory_space<vmem>>, vector<1x128x128xbf16>
    %152 = vector.shape_cast %151 : vector<1x128x128xbf16> to vector<128x128xbf16>
    %cst_60 = arith.constant dense<0.000000e+00> : vector<16x128xf32>
    %153 = tpu.matmul %150, %152, %cst_60 {dimension_numbers = #tpu.dot_dimension_numbers<[1], [0], [0], [1], [0, 0, 1, 1], [], []>} : vector<16x128xbf16>, vector<128x128xbf16>, vector<16x128xf32> -> vector<16x128xf32>
    %c0_61 = arith.constant 0 : index
    %c0_62 = arith.constant 0 : index
    %c0_63 = arith.constant 0 : index
    %154 = vector.load %arg11[%c0_61, %c0_62, %c0_63] : memref<1x1x128xf32, #tpu.memory_space<vmem>>, vector<1x1x128xf32>
    %155 = vector.shape_cast %154 : vector<1x1x128xf32> to vector<1x128xf32>
    %156 = vector.broadcast %155 : vector<1x128xf32> to vector<16x128xf32>
    %157 = arith.addf %153, %156 : vector<16x128xf32>
    %cst_64 = arith.constant 0.000000e+00 : f32
    %158 = vector.broadcast %cst_64 : f32 to vector<16x128xf32>
    %159 = arith.maximumf %157, %158 : vector<16x128xf32>
    %160 = arith.truncf %159 : vector<16x128xf32> to vector<16x128xbf16>
    %c0_65 = arith.constant 0 : index
    %c0_66 = arith.constant 0 : index
    %c0_67 = arith.constant 0 : index
    %161 = vector.load %arg12[%c0_65, %c0_66, %c0_67] : memref<1x128x128xbf16, #tpu.memory_space<vmem>>, vector<1x128x128xbf16>
    %162 = vector.shape_cast %161 : vector<1x128x128xbf16> to vector<128x128xbf16>
    %cst_68 = arith.constant dense<0.000000e+00> : vector<16x128xf32>
    %163 = tpu.matmul %160, %162, %cst_68 {dimension_numbers = #tpu.dot_dimension_numbers<[1], [0], [0], [1], [0, 0, 1, 1], [], []>} : vector<16x128xbf16>, vector<128x128xbf16>, vector<16x128xf32> -> vector<16x128xf32>
    %c0_69 = arith.constant 0 : index
    %c0_70 = arith.constant 0 : index
    %c0_71 = arith.constant 0 : index
    %164 = vector.load %arg13[%c0_69, %c0_70, %c0_71] : memref<1x1x128xf32, #tpu.memory_space<vmem>>, vector<1x1x128xf32>
    %165 = vector.shape_cast %164 : vector<1x1x128xf32> to vector<1x128xf32>
    %166 = vector.broadcast %165 : vector<1x128xf32> to vector<16x128xf32>
    %167 = arith.addf %163, %166 : vector<16x128xf32>
    %168 = arith.addf %149, %167 : vector<16x128xf32>
    %c0_72 = arith.constant 0 : index
    %c0_73 = arith.constant 0 : index
    %c0_74 = arith.constant 0 : index
    %169 = vector.load %arg14[%c0_72, %c0_73, %c0_74] : memref<1x1x128xf32, #tpu.memory_space<vmem>>, vector<1x1x128xf32>
    %170 = vector.shape_cast %169 : vector<1x1x128xf32> to vector<1x128xf32>
    %c0_75 = arith.constant 0 : index
    %c0_76 = arith.constant 0 : index
    %c0_77 = arith.constant 0 : index
    %171 = vector.load %arg15[%c0_75, %c0_76, %c0_77] : memref<1x1x128xf32, #tpu.memory_space<vmem>>, vector<1x1x128xf32>
    %172 = vector.shape_cast %171 : vector<1x1x128xf32> to vector<1x128xf32>
    %cst_78 = arith.constant dense<0.000000e+00> : vector<16xf32>
    %173 = vector.multi_reduction <add>, %168, %cst_78 [1] : vector<16x128xf32> to vector<16xf32>
    %174 = vector.shape_cast %173 : vector<16xf32> to vector<16x1xf32>
    %cst_79 = arith.constant 1.280000e+02 : f32
    %175 = vector.broadcast %cst_79 : f32 to vector<16x1xf32>
    %176 = arith.divf %174, %175 : vector<16x1xf32>
    %177 = vector.broadcast %176 : vector<16x1xf32> to vector<16x128xf32>
    %178 = arith.subf %168, %177 : vector<16x128xf32>
    %179 = arith.mulf %178, %178 : vector<16x128xf32>
    %cst_80 = arith.constant dense<0.000000e+00> : vector<16xf32>
    %180 = vector.multi_reduction <add>, %179, %cst_80 [1] : vector<16x128xf32> to vector<16xf32>
    %181 = vector.shape_cast %180 : vector<16xf32> to vector<16x1xf32>
    %cst_81 = arith.constant 1.280000e+02 : f32
    %182 = vector.broadcast %cst_81 : f32 to vector<16x1xf32>
    %183 = arith.divf %181, %182 : vector<16x1xf32>
    %cst_82 = arith.constant 9.99999974E-6 : f32
    %184 = vector.broadcast %cst_82 : f32 to vector<16x1xf32>
    %185 = arith.addf %183, %184 : vector<16x1xf32>
    %186 = math.rsqrt %185 : vector<16x1xf32>
    %187 = vector.broadcast %186 : vector<16x1xf32> to vector<16x128xf32>
    %188 = arith.mulf %178, %187 : vector<16x128xf32>
    %189 = vector.broadcast %170 : vector<1x128xf32> to vector<16x128xf32>
    %190 = arith.mulf %188, %189 : vector<16x128xf32>
    %191 = vector.broadcast %172 : vector<1x128xf32> to vector<16x128xf32>
    %192 = arith.addf %190, %191 : vector<16x128xf32>
    %193 = vector.shape_cast %192 : vector<16x128xf32> to vector<2x8x128xf32>
    %c0_83 = arith.constant 0 : index
    %c0_84 = arith.constant 0 : index
    %c0_85 = arith.constant 0 : index
    %194 = vector.load %arg16[%c0_83, %c0_84, %c0_85] : memref<2x8x128xf32, #tpu.memory_space<vmem>>, vector<2x8x128xf32>
    tpu.vector_store %arg16[%c0_83, %c0_84, %c0_85], %193 {strides = array<i32>} : memref<2x8x128xf32, #tpu.memory_space<vmem>>, vector<2x8x128xf32>,
    return
  }
  func.func @transform_0(%arg0: i32, %arg1: i32) -> (i32, i32, i32) {
    %c0_i32 = arith.constant 0 : i32
    %c0_i32_0 = arith.constant 0 : i32
    %c0_i32_1 = arith.constant 0 : i32
    return %arg0, %c0_i32, %c0_i32_0 : i32, i32, i32
  }
  func.func @transform_1(%arg0: i32, %arg1: i32) -> (i32, i32, i32) {
    %c0_i32 = arith.constant 0 : i32
    %c0_i32_0 = arith.constant 0 : i32
    %c0_i32_1 = arith.constant 0 : i32
    return %arg0, %c0_i32, %c0_i32_0 : i32, i32, i32
  }
  func.func @transform_2(%arg0: i32, %arg1: i32) -> (i32, i32, i32) {
    %c0_i32 = arith.constant 0 : i32
    %c0_i32_0 = arith.constant 0 : i32
    %c0_i32_1 = arith.constant 0 : i32
    return %arg1, %c0_i32, %c0_i32_0 : i32, i32, i32
  }
  func.func @transform_3(%arg0: i32, %arg1: i32) -> (i32, i32, i32) {
    %c0_i32 = arith.constant 0 : i32
    %c0_i32_0 = arith.constant 0 : i32
    %c0_i32_1 = arith.constant 0 : i32
    return %arg1, %c0_i32, %c0_i32_0 : i32, i32, i32
  }
  func.func @transform_4(%arg0: i32, %arg1: i32) -> (i32, i32, i32) {
    %c0_i32 = arith.constant 0 : i32
    %c0_i32_0 = arith.constant 0 : i32
    %c0_i32_1 = arith.constant 0 : i32
    return %arg1, %c0_i32, %c0_i32_0 : i32, i32, i32
  }
  func.func @transform_5(%arg0: i32, %arg1: i32) -> (i32, i32, i32) {
    %c0_i32 = arith.constant 0 : i32
    %c0_i32_0 = arith.constant 0 : i32
    %c0_i32_1 = arith.constant 0 : i32
    return %arg1, %c0_i32, %c0_i32_0 : i32, i32, i32
  }
  func.func @transform_6(%arg0: i32, %arg1: i32) -> (i32, i32, i32) {
    %c0_i32 = arith.constant 0 : i32
    %c0_i32_0 = arith.constant 0 : i32
    %c0_i32_1 = arith.constant 0 : i32
    return %arg1, %c0_i32, %c0_i32_0 : i32, i32, i32
  }
  func.func @transform_7(%arg0: i32, %arg1: i32) -> (i32, i32, i32) {
    %c0_i32 = arith.constant 0 : i32
    %c0_i32_0 = arith.constant 0 : i32
    %c0_i32_1 = arith.constant 0 : i32
    return %arg1, %c0_i32, %c0_i32_0 : i32, i32, i32
  }
  func.func @transform_8(%arg0: i32, %arg1: i32) -> (i32, i32, i32) {
    %c0_i32 = arith.constant 0 : i32
    %c0_i32_0 = arith.constant 0 : i32
    %c0_i32_1 = arith.constant 0 : i32
    return %arg1, %c0_i32, %c0_i32_0 : i32, i32, i32
  }
  func.func @transform_9(%arg0: i32, %arg1: i32) -> (i32, i32, i32) {
    %c0_i32 = arith.constant 0 : i32
    %c0_i32_0 = arith.constant 0 : i32
    %c0_i32_1 = arith.constant 0 : i32
    return %arg1, %c0_i32, %c0_i32_0 : i32, i32, i32
  }
  func.func @transform_10(%arg0: i32, %arg1: i32) -> (i32, i32, i32) {
    %c0_i32 = arith.constant 0 : i32
    %c0_i32_0 = arith.constant 0 : i32
    %c0_i32_1 = arith.constant 0 : i32
    return %arg1, %c0_i32, %c0_i32_0 : i32, i32, i32
  }
  func.func @transform_11(%arg0: i32, %arg1: i32) -> (i32, i32, i32) {
    %c0_i32 = arith.constant 0 : i32
    %c0_i32_0 = arith.constant 0 : i32
    %c0_i32_1 = arith.constant 0 : i32
    return %arg1, %c0_i32, %c0_i32_0 : i32, i32, i32
  }
  func.func @transform_12(%arg0: i32, %arg1: i32) -> (i32, i32, i32) {
    %c0_i32 = arith.constant 0 : i32
    %c0_i32_0 = arith.constant 0 : i32
    %c0_i32_1 = arith.constant 0 : i32
    return %arg1, %c0_i32, %c0_i32_0 : i32, i32, i32
  }
  func.func @transform_13(%arg0: i32, %arg1: i32) -> (i32, i32, i32) {
    %c0_i32 = arith.constant 0 : i32
    %c0_i32_0 = arith.constant 0 : i32
    %c0_i32_1 = arith.constant 0 : i32
    return %arg1, %c0_i32, %c0_i32_0 : i32, i32, i32
  }
  func.func @transform_14(%arg0: i32, %arg1: i32) -> (i32, i32, i32) {
    %c0_i32 = arith.constant 0 : i32
    %c0_i32_0 = arith.constant 0 : i32
    %c0_i32_1 = arith.constant 0 : i32
    return %arg0, %c0_i32, %c0_i32_0 : i32, i32, i32
  }
}

</mosaic_0001>

<llo_original>
// kernel: tpu_custom_call.1
$region0: #{tpu_custom_call.1}
  #allocation0 [shape = 'u32[]', space=smem, size = 0x4, offset = 0x4, fixed_abs, tag = 'smem constant byte address 0x4 - core index']
  #allocation1 [shape = 'u32[144,128]{1,0:T(1,128)}', space=vmem, size = 0x12000, scoped, tag = 'internal scratch']
  %s0 = inlined_call_operand.hbm [shape: f32[2,8,128], index: 0, kind: input, shape index: {}]
  %s1 = inlined_call_operand.hbm [shape: f32[2,16,128], index: 1, kind: input, shape index: {}]
  %s2 = inlined_call_operand.hbm [shape: bf16[2,128,128], index: 2, kind: input, shape index: {}]
  %s3 = inlined_call_operand.hbm [shape: bf16[2,128,256], index: 3, kind: input, shape index: {}]
  %s4 = inlined_call_operand.hbm [shape: bf16[2,128,128], index: 4, kind: input, shape index: {}]
  %s5 = inlined_call_operand.vmem [shape: f32[2,1,128], index: 5, kind: input, shape index: {}]
  %s6 = inlined_call_operand.vmem [shape: f32[2,1,128], index: 6, kind: input, shape index: {}]
  %s7 = inlined_call_operand.vmem [shape: f32[2,1,128], index: 7, kind: input, shape index: {}]
  %s8 = inlined_call_operand.hbm [shape: bf16[2,128,128], index: 8, kind: input, shape index: {}]
  %s9 = inlined_call_operand.vmem [shape: f32[2,1,128], index: 9, kind: input, shape index: {}]
  %s10 = inlined_call_operand.hbm [shape: bf16[2,128,128], index: 10, kind: input, shape index: {}]
  %s11 = inlined_call_operand.vmem [shape: f32[2,1,128], index: 11, kind: input, shape index: {}]
  %s12 = inlined_call_operand.vmem [shape: f32[2,1,128], index: 12, kind: input, shape index: {}]
  %s13 = inlined_call_operand.vmem [shape: f32[2,1,128], index: 13, kind: input, shape index: {}]
  %s14 = inlined_call_operand.hbm [shape: f32[2,8,128], index: 14, kind: output, shape index: {}]
  %s15 = sld [smem:[#allocation0]]
  $region121: #{tpu_custom_call.1} parent=0
    _
  %s17 = ssub.s32 1, %s15
  %s18 = scalar_select 0, %s17, %s15
  $region1: #{tpu_custom_call.1} parent=0
    #allocation2 [shape = 'u8[8192]{0}', space=vmem, size = 0x2000, scoped, tag = 'input window, operand 0, single buffered']
    #allocation3 [shape = 's32[2]{0}', space=sflag, size = 0x8, scoped, tag = 'scoped memory for tpu_custom_call.1']
    #allocation4 [shape = 's32[2]{0}', space=sflag, size = 0x8, scoped, tag = 'scoped memory for tpu_custom_call.1']
    #allocation5 [shape = 'u8[16384]{0}', space=vmem, size = 0x4000, scoped, tag = 'input window, operand 1, single buffered']
    #allocation6 [shape = 's32[1]{0}', space=sflag, size = 0x4, scoped, tag = 'scoped memory for tpu_custom_call.1']
    #allocation7 [shape = 'u8[65536]{0}', space=vmem, size = 0x10000, scoped, tag = 'input window, operand 2']
    #allocation8 [shape = 'u8[131072]{0}', space=vmem, size = 0x20000, scoped, tag = 'input window, operand 3']
    #allocation9 [shape = 'u8[65536]{0}', space=vmem, size = 0x10000, scoped, tag = 'input window, operand 4']
    #allocation10 [shape = 'u8[65536]{0}', space=vmem, size = 0x10000, scoped, tag = 'input window, operand 8']
    #allocation11 [shape = 'u8[65536]{0}', space=vmem, size = 0x10000, scoped, tag = 'input window, operand 10']
    #allocation12 [shape = 'u8[8192]{0}', space=vmem, size = 0x2000, scoped, tag = 'output window, operand 0, single buffered']
    %19 = vsyncpa [#allocation3], 0
    %20 = vsyncpa [#allocation6], 0
    %21 = vsyncpa [#allocation4], 0
    loop: start=0, step=1, limit=4
    $region2: #{tpu_custom_call.1} parent=1 // loop_pre_header
      _
    $region3: #{tpu_custom_call.1} parent=1 // loop_header
      %s23 = sphi 0, %s27
      %p24 = scmp.ge.s32.totalorder %s23, 4
      %s30 = sphi 0, %s42
      %s31 = sphi 0, %s38
      %s32 = sphi 0, %s30
      %s33 = sphi 0, %s31
      %s34 = sphi 0, %s32
      %s35 = sphi 0, %s33
      %s45 = sphi 0, %s47
      %s48 = sphi 0, %s45
      %s49 = sphi 0, %s48
      %s65 = sphi 0, %s49
      %s71 = sphi 0, %s73
      %s74 = sphi 0, %s71
      %s75 = sphi 0, %s74
      %s91 = sphi 0, %s75
      %s97 = sphi 0, %s99
      %s100 = sphi 0, %s97
      %s101 = sphi 0, %s100
      %s117 = sphi 0, %s101
      %s123 = sphi 0, %s125
      %s126 = sphi 0, %s123
      %s127 = sphi 0, %s126
      %s143 = sphi 0, %s127
      %s149 = sphi 0, %s151
      %s152 = sphi 0, %s149
      %s153 = sphi 0, %s152
      %s169 = sphi 0, %s153
      %s175 = sphi 0, %s177
      %s178 = sphi 0, %s175
      %s179 = sphi 0, %s178
      %s195 = sphi 0, %s179
      %s201 = sphi 0, %s203
      %s204 = sphi 0, %s201
      %s205 = sphi 0, %s204
      %s221 = sphi 0, %s205
      %s227 = sphi 0, %s229
      %s230 = sphi 0, %s227
      %s231 = sphi 0, %s230
      %s247 = sphi 0, %s231
      %s253 = sphi 0, %s255
      %s256 = sphi 0, %s253
      %s257 = sphi 0, %s256
      %s273 = sphi 0, %s257
      %s279 = sphi 0, %s281
      %s282 = sphi 0, %s279
      %s283 = sphi 0, %s282
      %s299 = sphi 0, %s283
      %s305 = sphi 0, %s307
      %s308 = sphi 0, %s305
      %s309 = sphi 0, %s308
      %s325 = sphi 0, %s309
      %s331 = sphi 0, %s333
      %s334 = sphi 0, %s331
      %s335 = sphi 0, %s334
      %s351 = sphi 0, %s335
      %s357 = sphi 0, %s359
      %s360 = sphi 0, %s357
      %s361 = sphi 0, %s360
      %s377 = sphi 0, %s361
      %s383 = sphi 0, %s385
      %s386 = sphi 0, %s383
      %s387 = sphi 0, %s386
      %s403 = sphi 0, %s387
      %s409 = sphi 0, %s411
      %s412 = sphi 0, %s409
      %s413 = sphi 0, %s412
      %s429 = sphi 0, %s413
    $region4: #{tpu_custom_call.1} parent=1 // loop_header_branch
      %26 = sbr.rel (%p24) target = $region8
    $region5: #{tpu_custom_call.1} parent=1 // loop_body
      %s28 = ssub.s32 %s23, 1
      %s29 = ssub.s32 %s23, 2
      %s36 = sadd.s32 1, %s31
      %p37 = scmp.ge.s32.totalorder %s36, 2
      %s38 = scalar_select %p37, 0, %s36
      %s39 = sadd.s32 1, %s30
      %s40 = scalar_select %p37, %s39, %s30
      %p41 = scmp.ge.s32.totalorder %s40, 1
      %s42 = scalar_select %p41, 0, %s40
      %s43 = ssub.s32 %s30, %s42
      %p44 = scmp.eq.s32.totalorder %s43, 0
      %s46 = sadd.s32 %s45, 1
      %s47 = scalar_select %p44, %s45, %s46
      %p50 = pneg %p44
      %p51 = scmp.eq.s32.totalorder %s23, 1
      %p52 = por %p50, %p51
      %p53 = scmp.ne.s32.totalorder %s45, %s48
      %p54 = scmp.eq.s32.totalorder %s23, 0
      %p55 = por %p53, %p54
      %p56 = scmp.ne.s32.totalorder %s45, %s48
      %p57 = scmp.eq.s32.totalorder %s28, 1
      %p58 = por %p56, %p57
      %p59 = scmp.ne.s32.totalorder %s48, %s49
      %p60 = scmp.eq.s32.totalorder %s28, 0
      %p61 = por %p59, %p60
      %p62 = scmp.ne.s32.totalorder %s48, %s49
      %p63 = scmp.eq.s32.totalorder %s29, 1
      %p64 = por %p62, %p63
      %p66 = scmp.ne.s32.totalorder %s49, %s65
      %p67 = scmp.eq.s32.totalorder %s29, 0
      %p68 = por %p66, %p67
      %s69 = ssub.s32 %s30, %s42
      %p70 = scmp.eq.s32.totalorder %s69, 0
      %s72 = sadd.s32 %s71, 1
      %s73 = scalar_select %p70, %s71, %s72
      %p76 = pneg %p70
      %p77 = scmp.eq.s32.totalorder %s23, 1
      %p78 = por %p76, %p77
      %p79 = scmp.ne.s32.totalorder %s71, %s74
      %p80 = scmp.eq.s32.totalorder %s23, 0
      %p81 = por %p79, %p80
      %p82 = scmp.ne.s32.totalorder %s71, %s74
      %p83 = scmp.eq.s32.totalorder %s28, 1
      %p84 = por %p82, %p83
      %p85 = scmp.ne.s32.totalorder %s74, %s75
      %p86 = scmp.eq.s32.totalorder %s28, 0
      %p87 = por %p85, %p86
      %p88 = scmp.ne.s32.totalorder %s74, %s75
      %p89 = scmp.eq.s32.totalorder %s29, 1
      %p90 = por %p88, %p89
      %p92 = scmp.ne.s32.totalorder %s75, %s91
      %p93 = scmp.eq.s32.totalorder %s29, 0
      %p94 = por %p92, %p93
      %s95 = ssub.s32 %s31, %s38
      %p96 = scmp.eq.s32.totalorder %s95, 0
      %s98 = sadd.s32 %s97, 1
      %s99 = scalar_select %p96, %s97, %s98
      %p102 = pneg %p96
      %p103 = scmp.eq.s32.totalorder %s23, 1
      %p104 = por %p102, %p103
      %p105 = scmp.ne.s32.totalorder %s97, %s100
      %p106 = scmp.eq.s32.totalorder %s23, 0
      %p107 = por %p105, %p106
      %p108 = scmp.ne.s32.totalorder %s97, %s100
      %p109 = scmp.eq.s32.totalorder %s28, 1
      %p110 = por %p108, %p109
      %p111 = scmp.ne.s32.totalorder %s100, %s101
      %p112 = scmp.eq.s32.totalorder %s28, 0
      %p113 = por %p111, %p112
      %p114 = scmp.ne.s32.totalorder %s100, %s101
      %p115 = scmp.eq.s32.totalorder %s29, 1
      %p116 = por %p114, %p115
      %p118 = scmp.ne.s32.totalorder %s101, %s117
      %p119 = scmp.eq.s32.totalorder %s29, 0
      %p120 = por %p118, %p119
      %s121 = ssub.s32 %s31, %s38
      %p122 = scmp.eq.s32.totalorder %s121, 0
      %s124 = sadd.s32 %s123, 1
      %s125 = scalar_select %p122, %s123, %s124
      %p128 = pneg %p122
      %p129 = scmp.eq.s32.totalorder %s23, 1
      %p130 = por %p128, %p129
      %p131 = scmp.ne.s32.totalorder %s123, %s126
      %p132 = scmp.eq.s32.totalorder %s23, 0
      %p133 = por %p131, %p132
      %p134 = scmp.ne.s32.totalorder %s123, %s126
      %p135 = scmp.eq.s32.totalorder %s28, 1
      %p136 = por %p134, %p135
      %p137 = scmp.ne.s32.totalorder %s126, %s127
      %p138 = scmp.eq.s32.totalorder %s28, 0
      %p139 = por %p137, %p138
      %p140 = scmp.ne.s32.totalorder %s126, %s127
      %p141 = scmp.eq.s32.totalorder %s29, 1
      %p142 = por %p140, %p141
      %p144 = scmp.ne.s32.totalorder %s127, %s143
      %p145 = scmp.eq.s32.totalorder %s29, 0
      %p146 = por %p144, %p145
      %s147 = ssub.s32 %s31, %s38
      %p148 = scmp.eq.s32.totalorder %s147, 0
      %s150 = sadd.s32 %s149, 1
      %s151 = scalar_select %p148, %s149, %s150
      %p154 = pneg %p148
      %p155 = scmp.eq.s32.totalorder %s23, 1
      %p156 = por %p154, %p155
      %p157 = scmp.ne.s32.totalorder %s149, %s152
      %p158 = scmp.eq.s32.totalorder %s23, 0
      %p159 = por %p157, %p158
      %p160 = scmp.ne.s32.totalorder %s149, %s152
      %p161 = scmp.eq.s32.totalorder %s28, 1
      %p162 = por %p160, %p161
      %p163 = scmp.ne.s32.totalorder %s152, %s153
      %p164 = scmp.eq.s32.totalorder %s28, 0
      %p165 = por %p163, %p164
      %p166 = scmp.ne.s32.totalorder %s152, %s153
      %p167 = scmp.eq.s32.totalorder %s29, 1
      %p168 = por %p166, %p167
      %p170 = scmp.ne.s32.totalorder %s153, %s169
      %p171 = scmp.eq.s32.totalorder %s29, 0
      %p172 = por %p170, %p171
      %s173 = ssub.s32 %s31, %s38
      %p174 = scmp.eq.s32.totalorder %s173, 0
      %s176 = sadd.s32 %s175, 1
      %s177 = scalar_select %p174, %s175, %s176
      %p180 = pneg %p174
      %p181 = scmp.eq.s32.totalorder %s23, 1
      %p182 = por %p180, %p181
      %p183 = scmp.ne.s32.totalorder %s175, %s178
      %p184 = scmp.eq.s32.totalorder %s23, 0
      %p185 = por %p183, %p184
      %p186 = scmp.ne.s32.totalorder %s175, %s178
      %p187 = scmp.eq.s32.totalorder %s28, 1
      %p188 = por %p186, %p187
      %p189 = scmp.ne.s32.totalorder %s178, %s179
      %p190 = scmp.eq.s32.totalorder %s28, 0
      %p191 = por %p189, %p190
      %p192 = scmp.ne.s32.totalorder %s178, %s179
      %p193 = scmp.eq.s32.totalorder %s29, 1
      %p194 = por %p192, %p193
      %p196 = scmp.ne.s32.totalorder %s179, %s195
      %p197 = scmp.eq.s32.totalorder %s29, 0
      %p198 = por %p196, %p197
      %s199 = ssub.s32 %s31, %s38
      %p200 = scmp.eq.s32.totalorder %s199, 0
      %s202 = sadd.s32 %s201, 1
      %s203 = scalar_select %p200, %s201, %s202
      %p206 = pneg %p200
      %p207 = scmp.eq.s32.totalorder %s23, 1
      %p208 = por %p206, %p207
      %p209 = scmp.ne.s32.totalorder %s201, %s204
      %p210 = scmp.eq.s32.totalorder %s23, 0
      %p211 = por %p209, %p210
      %p212 = scmp.ne.s32.totalorder %s201, %s204
      %p213 = scmp.eq.s32.totalorder %s28, 1
      %p214 = por %p212, %p213
      %p215 = scmp.ne.s32.totalorder %s204, %s205
      %p216 = scmp.eq.s32.totalorder %s28, 0
      %p217 = por %p215, %p216
      %p218 = scmp.ne.s32.totalorder %s204, %s205
      %p219 = scmp.eq.s32.totalorder %s29, 1
      %p220 = por %p218, %p219
      %p222 = scmp.ne.s32.totalorder %s205, %s221
      %p223 = scmp.eq.s32.totalorder %s29, 0
      %p224 = por %p222, %p223
      %s225 = ssub.s32 %s31, %s38
      %p226 = scmp.eq.s32.totalorder %s225, 0
      %s228 = sadd.s32 %s227, 1
      %s229 = scalar_select %p226, %s227, %s228
      %p232 = pneg %p226
      %p233 = scmp.eq.s32.totalorder %s23, 1
      %p234 = por %p232, %p233
      %p235 = scmp.ne.s32.totalorder %s227, %s230
      %p236 = scmp.eq.s32.totalorder %s23, 0
      %p237 = por %p235, %p236
      %p238 = scmp.ne.s32.totalorder %s227, %s230
      %p239 = scmp.eq.s32.totalorder %s28, 1
      %p240 = por %p238, %p239
      %p241 = scmp.ne.s32.totalorder %s230, %s231
      %p242 = scmp.eq.s32.totalorder %s28, 0
      %p243 = por %p241, %p242
      %p244 = scmp.ne.s32.totalorder %s230, %s231
      %p245 = scmp.eq.s32.totalorder %s29, 1
      %p246 = por %p244, %p245
      %p248 = scmp.ne.s32.totalorder %s231, %s247
      %p249 = scmp.eq.s32.totalorder %s29, 0
      %p250 = por %p248, %p249
      %s251 = ssub.s32 %s31, %s38
      %p252 = scmp.eq.s32.totalorder %s251, 0
      %s254 = sadd.s32 %s253, 1
      %s255 = scalar_select %p252, %s253, %s254
      %p258 = pneg %p252
      %p259 = scmp.eq.s32.totalorder %s23, 1
      %p260 = por %p258, %p259
      %p261 = scmp.ne.s32.totalorder %s253, %s256
      %p262 = scmp.eq.s32.totalorder %s23, 0
      %p263 = por %p261, %p262
      %p264 = scmp.ne.s32.totalorder %s253, %s256
      %p265 = scmp.eq.s32.totalorder %s28, 1
      %p266 = por %p264, %p265
      %p267 = scmp.ne.s32.totalorder %s256, %s257
      %p268 = scmp.eq.s32.totalorder %s28, 0
      %p269 = por %p267, %p268
      %p270 = scmp.ne.s32.totalorder %s256, %s257
      %p271 = scmp.eq.s32.totalorder %s29, 1
      %p272 = por %p270, %p271
      %p274 = scmp.ne.s32.totalorder %s257, %s273
      %p275 = scmp.eq.s32.totalorder %s29, 0
      %p276 = por %p274, %p275
      %s277 = ssub.s32 %s31, %s38
      %p278 = scmp.eq.s32.totalorder %s277, 0
      %s280 = sadd.s32 %s279, 1
      %s281 = scalar_select %p278, %s279, %s280
      %p284 = pneg %p278
      %p285 = scmp.eq.s32.totalorder %s23, 1
      %p286 = por %p284, %p285
      %p287 = scmp.ne.s32.totalorder %s279, %s282
      %p288 = scmp.eq.s32.totalorder %s23, 0
      %p289 = por %p287, %p288
      %p290 = scmp.ne.s32.totalorder %s279, %s282
      %p291 = scmp.eq.s32.totalorder %s28, 1
      %p292 = por %p290, %p291
      %p293 = scmp.ne.s32.totalorder %s282, %s283
      %p294 = scmp.eq.s32.totalorder %s28, 0
      %p295 = por %p293, %p294
      %p296 = scmp.ne.s32.totalorder %s282, %s283
      %p297 = scmp.eq.s32.totalorder %s29, 1
      %p298 = por %p296, %p297
      %p300 = scmp.ne.s32.totalorder %s283, %s299
      %p301 = scmp.eq.s32.totalorder %s29, 0
      %p302 = por %p300, %p301
      %s303 = ssub.s32 %s31, %s38
      %p304 = scmp.eq.s32.totalorder %s303, 0
      %s306 = sadd.s32 %s305, 1
      %s307 = scalar_select %p304, %s305, %s306
      %p310 = pneg %p304
      %p311 = scmp.eq.s32.totalorder %s23, 1
      %p312 = por %p310, %p311
      %p313 = scmp.ne.s32.totalorder %s305, %s308
      %p314 = scmp.eq.s32.totalorder %s23, 0
      %p315 = por %p313, %p314
      %p316 = scmp.ne.s32.totalorder %s305, %s308
      %p317 = scmp.eq.s32.totalorder %s28, 1
      %p318 = por %p316, %p317
      %p319 = scmp.ne.s32.totalorder %s308, %s309
      %p320 = scmp.eq.s32.totalorder %s28, 0
      %p321 = por %p319, %p320
      %p322 = scmp.ne.s32.totalorder %s308, %s309
      %p323 = scmp.eq.s32.totalorder %s29, 1
      %p324 = por %p322, %p323
      %p326 = scmp.ne.s32.totalorder %s309, %s325
      %p327 = scmp.eq.s32.totalorder %s29, 0
      %p328 = por %p326, %p327
      %s329 = ssub.s32 %s31, %s38
      %p330 = scmp.eq.s32.totalorder %s329, 0
      %s332 = sadd.s32 %s331, 1
      %s333 = scalar_select %p330, %s331, %s332
      %p336 = pneg %p330
      %p337 = scmp.eq.s32.totalorder %s23, 1
      %p338 = por %p336, %p337
      %p339 = scmp.ne.s32.totalorder %s331, %s334
      %p340 = scmp.eq.s32.totalorder %s23, 0
      %p341 = por %p339, %p340
      %p342 = scmp.ne.s32.totalorder %s331, %s334
      %p343 = scmp.eq.s32.totalorder %s28, 1
      %p344 = por %p342, %p343
      %p345 = scmp.ne.s32.totalorder %s334, %s335
      %p346 = scmp.eq.s32.totalorder %s28, 0
      %p347 = por %p345, %p346
      %p348 = scmp.ne.s32.totalorder %s334, %s335
      %p349 = scmp.eq.s32.totalorder %s29, 1
      %p350 = por %p348, %p349
      %p352 = scmp.ne.s32.totalorder %s335, %s351
      %p353 = scmp.eq.s32.totalorder %s29, 0
      %p354 = por %p352, %p353
      %s355 = ssub.s32 %s31, %s38
      %p356 = scmp.eq.s32.totalorder %s355, 0
      %s358 = sadd.s32 %s357, 1
      %s359 = scalar_select %p356, %s357, %s358
      %p362 = pneg %p356
      %p363 = scmp.eq.s32.totalorder %s23, 1
      %p364 = por %p362, %p363
      %p365 = scmp.ne.s32.totalorder %s357, %s360
      %p366 = scmp.eq.s32.totalorder %s23, 0
      %p367 = por %p365, %p366
      %p368 = scmp.ne.s32.totalorder %s357, %s360
      %p369 = scmp.eq.s32.totalorder %s28, 1
      %p370 = por %p368, %p369
      %p371 = scmp.ne.s32.totalorder %s360, %s361
      %p372 = scmp.eq.s32.totalorder %s28, 0
      %p373 = por %p371, %p372
      %p374 = scmp.ne.s32.totalorder %s360, %s361
      %p375 = scmp.eq.s32.totalorder %s29, 1
      %p376 = por %p374, %p375
      %p378 = scmp.ne.s32.totalorder %s361, %s377
      %p379 = scmp.eq.s32.totalorder %s29, 0
      %p380 = por %p378, %p379
      %s381 = ssub.s32 %s31, %s38
      %p382 = scmp.eq.s32.totalorder %s381, 0
      %s384 = sadd.s32 %s383, 1
      %s385 = scalar_select %p382, %s383, %s384
      %p388 = pneg %p382
      %p389 = scmp.eq.s32.totalorder %s23, 1
      %p390 = por %p388, %p389
      %p391 = scmp.ne.s32.totalorder %s383, %s386
      %p392 = scmp.eq.s32.totalorder %s23, 0
      %p393 = por %p391, %p392
      %p394 = scmp.ne.s32.totalorder %s383, %s386
      %p395 = scmp.eq.s32.totalorder %s28, 1
      %p396 = por %p394, %p395
      %p397 = scmp.ne.s32.totalorder %s386, %s387
      %p398 = scmp.eq.s32.totalorder %s28, 0
      %p399 = por %p397, %p398
      %p400 = scmp.ne.s32.totalorder %s386, %s387
      %p401 = scmp.eq.s32.totalorder %s29, 1
      %p402 = por %p400, %p401
      %p404 = scmp.ne.s32.totalorder %s387, %s403
      %p405 = scmp.eq.s32.totalorder %s29, 0
      %p406 = por %p404, %p405
      %s407 = ssub.s32 %s30, %s42
      %p408 = scmp.eq.s32.totalorder %s407, 0
      %s410 = sadd.s32 %s409, 1
      %s411 = scalar_select %p408, %s409, %s410
      %p414 = pneg %p408
      %p415 = scmp.eq.s32.totalorder %s23, 1
      %p416 = por %p414, %p415
      %p417 = scmp.ne.s32.totalorder %s409, %s412
      %p418 = scmp.eq.s32.totalorder %s23, 0
      %p419 = por %p417, %p418
      %p420 = scmp.ne.s32.totalorder %s409, %s412
      %p421 = scmp.eq.s32.totalorder %s28, 1
      %p422 = por %p420, %p421
      %p423 = scmp.ne.s32.totalorder %s412, %s413
      %p424 = scmp.eq.s32.totalorder %s28, 0
      %p425 = por %p423, %p424
      %p426 = scmp.ne.s32.totalorder %s412, %s413
      %p427 = scmp.eq.s32.totalorder %s29, 1
      %p428 = por %p426, %p427
      %p430 = scmp.ne.s32.totalorder %s413, %s429
      %p431 = scmp.eq.s32.totalorder %s29, 0
      %p432 = por %p430, %p431
      %p433 = scmp.le.s32.totalorder 1, %s23
      %p434 = scmp.lt.s32.totalorder %s23, 3
      %p435 = pnand %p433, %p434
      %p436 = pneg %p435
      // Predicated region
      $region9: #{tpu_custom_call.1} parent=5 // pred_check
        _
      $region10: #{tpu_custom_call.1} parent=5 // pred_check_branch
        %438 = sbr.rel (%p435) target = $region12
      $region11: #{tpu_custom_call.1} parent=5 // pred_region
        %s439 = ssub.s32 %s23, 1
        // Predicated region
        $region13: #{tpu_custom_call.1} parent=11 // pred_check
          %p440 = pneg %p61
        $region14: #{tpu_custom_call.1} parent=11 // pred_check_branch
          %442 = sbr.rel (%p440) target = $region16
        $region15: #{tpu_custom_call.1} parent=11 // pred_region
          %s443 = smul.u32 2, %s32
          %s445 = ssub.s32 256, 256
          %446 = vsyncadd [#allocation3], %s445
          %s447 = smul.addr %s443, 128
          %s448 = scalar_lea.hbm %s0, %s447
          %s449 = sshll.u32 [#allocation2], 4
          %s450 = int_to_ptr.vmem [resolvable:$true] %s449
          %455 = dma.hbm_to_vmem [thread:$0]  %s448, 256, %s450, [#allocation3], 128, 128, 8
        $region16: #{tpu_custom_call.1} parent=11 // pred_fallthru
          _
        // Predicated region
        $region17: #{tpu_custom_call.1} parent=11 // pred_check
          %p456 = pneg %p87
        $region18: #{tpu_custom_call.1} parent=11 // pred_check_branch
          %458 = sbr.rel (%p456) target = $region20
        $region19: #{tpu_custom_call.1} parent=11 // pred_region
          %s459 = smul.u32 2, %s32
          %s461 = ssub.s32 512, 512
          %462 = vsyncadd [#allocation6], %s461
          %s463 = smul.addr %s459, 2
          %s464 = smul.addr %s463, 128
          %s465 = scalar_lea.hbm %s1, %s464
          %s466 = sshll.u32 [#allocation5], 4
          %s467 = int_to_ptr.vmem [resolvable:$true] %s466
          %472 = dma.hbm_to_vmem [thread:$0]  %s465, 512, %s467, [#allocation6], 128, 128, 8
        $region20: #{tpu_custom_call.1} parent=11 // pred_fallthru
          _
      $region12: #{tpu_custom_call.1} parent=5 // pred_fallthru
        _
      %p473 = scmp.lt.s32.totalorder %s23, 2
      // Predicated region
      $region21: #{tpu_custom_call.1} parent=5 // pred_check
        %p474 = pneg %p473
      $region22: #{tpu_custom_call.1} parent=5 // pred_check_branch
        %476 = sbr.rel (%p474) target = $region24
      $region23: #{tpu_custom_call.1} parent=5 // pred_region
        // Predicated region
        $region25: #{tpu_custom_call.1} parent=23 // pred_check
          %p477 = pneg %p107
        $region26: #{tpu_custom_call.1} parent=23 // pred_check_branch
          %479 = sbr.rel (%p477) target = $region28
        $region27: #{tpu_custom_call.1} parent=23 // pred_region
          %s480 = sand.u32 %s23, 1
          %s481 = scalar_lea.sflag [#allocation3], %s480
          %s482 = sand.u32 %s97, 1
          %s483 = smul.addr %s482, 64
          %s484 = scalar_lea.vmem [#allocation7], %s483
          %s486 = ssub.s32 1024, 1024
          %487 = vsyncadd %s481, %s486
          %s488 = smul.addr %s31, 16
          %s489 = smul.addr %s488, 64
          %s490 = scalar_lea.hbm %s2, %s489
          %s491 = sshll.u32 %s484, 4
          %s492 = int_to_ptr.vmem [resolvable:$true] %s491
          %497 = dma.hbm_to_vmem [thread:$0]  %s490, 1024, %s492, %s481, 64, 64, 4
        $region28: #{tpu_custom_call.1} parent=23 // pred_fallthru
          _
        // Predicated region
        $region29: #{tpu_custom_call.1} parent=23 // pred_check
          %p498 = pneg %p133
        $region30: #{tpu_custom_call.1} parent=23 // pred_check_branch
          %500 = sbr.rel (%p498) target = $region32
        $region31: #{tpu_custom_call.1} parent=23 // pred_region
          %s501 = sand.u32 %s23, 1
          %s502 = scalar_lea.sflag [#allocation3], %s501
          %s503 = sand.u32 %s123, 1
          %s504 = smul.addr %s503, 128
          %s505 = scalar_lea.vmem [#allocation8], %s504
          %s507 = ssub.s32 2048, 2048
          %508 = vsyncadd %s502, %s507
          %s509 = smul.addr %s31, 32
          %s510 = smul.addr %s509, 64
          %s511 = scalar_lea.hbm %s3, %s510
          %s512 = sshll.u32 %s505, 4
          %s513 = int_to_ptr.vmem [resolvable:$true] %s512
          %518 = dma.hbm_to_vmem [thread:$0]  %s511, 2048, %s513, %s502, 128, 128, 8
        $region32: #{tpu_custom_call.1} parent=23 // pred_fallthru
          _
        // Predicated region
        $region33: #{tpu_custom_call.1} parent=23 // pred_check
          %p519 = pneg %p159
        $region34: #{tpu_custom_call.1} parent=23 // pred_check_branch
          %521 = sbr.rel (%p519) target = $region36
        $region35: #{tpu_custom_call.1} parent=23 // pred_region
          %s522 = sand.u32 %s23, 1
          %s523 = scalar_lea.sflag [#allocation3], %s522
          %s524 = sand.u32 %s149, 1
          %s525 = smul.addr %s524, 64
          %s526 = scalar_lea.vmem [#allocation9], %s525
          %s528 = ssub.s32 1024, 1024
          %529 = vsyncadd %s523, %s528
          %s530 = smul.addr %s31, 16
          %s531 = smul.addr %s530, 64
          %s532 = scalar_lea.hbm %s4, %s531
          %s533 = sshll.u32 %s526, 4
          %s534 = int_to_ptr.vmem [resolvable:$true] %s533
          %539 = dma.hbm_to_vmem [thread:$0]  %s532, 1024, %s534, %s523, 64, 64, 4
        $region36: #{tpu_custom_call.1} parent=23 // pred_fallthru
          _
        // Predicated region
        $region37: #{tpu_custom_call.1} parent=23 // pred_check
          %p540 = pneg %p185
        $region38: #{tpu_custom_call.1} parent=23 // pred_check_branch
          %542 = sbr.rel (%p540) target = $region40
        $region39: #{tpu_custom_call.1} parent=23 // pred_region
          %p543 = scmp.lt.s32.totalorder %s31, 1
          %s544 = scalar_select %p543, %s31, 1
          %s545 = scalar_lea.vmem %s5, %s544
        $region40: #{tpu_custom_call.1} parent=23 // pred_fallthru
          _
        // Predicated region
        $region41: #{tpu_custom_call.1} parent=23 // pred_check
          %p546 = pneg %p211
        $region42: #{tpu_custom_call.1} parent=23 // pred_check_branch
          %548 = sbr.rel (%p546) target = $region44
        $region43: #{tpu_custom_call.1} parent=23 // pred_region
          %p549 = scmp.lt.s32.totalorder %s31, 1
          %s550 = scalar_select %p549, %s31, 1
          %s551 = scalar_lea.vmem %s6, %s550
        $region44: #{tpu_custom_call.1} parent=23 // pred_fallthru
          _
        // Predicated region
        $region45: #{tpu_custom_call.1} parent=23 // pred_check
          %p552 = pneg %p237
        $region46: #{tpu_custom_call.1} parent=23 // pred_check_branch
          %554 = sbr.rel (%p552) target = $region48
        $region47: #{tpu_custom_call.1} parent=23 // pred_region
          %p555 = scmp.lt.s32.totalorder %s31, 1
          %s556 = scalar_select %p555, %s31, 1
          %s557 = scalar_lea.vmem %s7, %s556
        $region48: #{tpu_custom_call.1} parent=23 // pred_fallthru
          _
        // Predicated region
        $region49: #{tpu_custom_call.1} parent=23 // pred_check
          %p558 = pneg %p263
        $region50: #{tpu_custom_call.1} parent=23 // pred_check_branch
          %560 = sbr.rel (%p558) target = $region52
        $region51: #{tpu_custom_call.1} parent=23 // pred_region
          %s561 = sand.u32 %s23, 1
          %s562 = scalar_lea.sflag [#allocation3], %s561
          %s563 = sand.u32 %s253, 1
          %s564 = smul.addr %s563, 64
          %s565 = scalar_lea.vmem [#allocation10], %s564
          %s567 = ssub.s32 1024, 1024
          %568 = vsyncadd %s562, %s567
          %s569 = smul.addr %s31, 16
          %s570 = smul.addr %s569, 64
          %s571 = scalar_lea.hbm %s8, %s570
          %s572 = sshll.u32 %s565, 4
          %s573 = int_to_ptr.vmem [resolvable:$true] %s572
          %578 = dma.hbm_to_vmem [thread:$0]  %s571, 1024, %s573, %s562, 64, 64, 4
        $region52: #{tpu_custom_call.1} parent=23 // pred_fallthru
          _
        // Predicated region
        $region53: #{tpu_custom_call.1} parent=23 // pred_check
          %p579 = pneg %p289
        $region54: #{tpu_custom_call.1} parent=23 // pred_check_branch
          %581 = sbr.rel (%p579) target = $region56
        $region55: #{tpu_custom_call.1} parent=23 // pred_region
          %p582 = scmp.lt.s32.totalorder %s31, 1
          %s583 = scalar_select %p582, %s31, 1
          %s584 = scalar_lea.vmem %s9, %s583
        $region56: #{tpu_custom_call.1} parent=23 // pred_fallthru
          _
        // Predicated region
        $region57: #{tpu_custom_call.1} parent=23 // pred_check
          %p585 = pneg %p315
        $region58: #{tpu_custom_call.1} parent=23 // pred_check_branch
          %587 = sbr.rel (%p585) target = $region60
        $region59: #{tpu_custom_call.1} parent=23 // pred_region
          %s588 = sand.u32 %s23, 1
          %s589 = scalar_lea.sflag [#allocation3], %s588
          %s590 = sand.u32 %s305, 1
          %s591 = smul.addr %s590, 64
          %s592 = scalar_lea.vmem [#allocation11], %s591
          %s594 = ssub.s32 1024, 1024
          %595 = vsyncadd %s589, %s594
          %s596 = smul.addr %s31, 16
          %s597 = smul.addr %s596, 64
          %s598 = scalar_lea.hbm %s10, %s597
          %s599 = sshll.u32 %s592, 4
          %s600 = int_to_ptr.vmem [resolvable:$true] %s599
          %605 = dma.hbm_to_vmem [thread:$0]  %s598, 1024, %s600, %s589, 64, 64, 4
        $region60: #{tpu_custom_call.1} parent=23 // pred_fallthru
          _
        // Predicated region
        $region61: #{tpu_custom_call.1} parent=23 // pred_check
          %p606 = pneg %p341
        $region62: #{tpu_custom_call.1} parent=23 // pred_check_branch
          %608 = sbr.rel (%p606) target = $region64
        $region63: #{tpu_custom_call.1} parent=23 // pred_region
          %p609 = scmp.lt.s32.totalorder %s31, 1
          %s610 = scalar_select %p609, %s31, 1
          %s611 = scalar_lea.vmem %s11, %s610
        $region64: #{tpu_custom_call.1} parent=23 // pred_fallthru
          _
        // Predicated region
        $region65: #{tpu_custom_call.1} parent=23 // pred_check
          %p612 = pneg %p367
        $region66: #{tpu_custom_call.1} parent=23 // pred_check_branch
          %614 = sbr.rel (%p612) target = $region68
        $region67: #{tpu_custom_call.1} parent=23 // pred_region
          %p615 = scmp.lt.s32.totalorder %s31, 1
          %s616 = scalar_select %p615, %s31, 1
          %s617 = scalar_lea.vmem %s12, %s616
        $region68: #{tpu_custom_call.1} parent=23 // pred_fallthru
          _
        // Predicated region
        $region69: #{tpu_custom_call.1} parent=23 // pred_check
          %p618 = pneg %p393
        $region70: #{tpu_custom_call.1} parent=23 // pred_check_branch
          %620 = sbr.rel (%p618) target = $region72
        $region71: #{tpu_custom_call.1} parent=23 // pred_region
          %p621 = scmp.lt.s32.totalorder %s31, 1
          %s622 = scalar_select %p621, %s31, 1
          %s623 = scalar_lea.vmem %s13, %s622
        $region72: #{tpu_custom_call.1} parent=23 // pred_fallthru
          _
      $region24: #{tpu_custom_call.1} parent=5 // pred_fallthru
        _
      %p624 = scmp.le.s32.totalorder 1, %s23
      %p625 = scmp.lt.s32.totalorder %s23, 3
      %p626 = pnand %p624, %p625
      %p627 = pneg %p626
      // Predicated region
      $region73: #{tpu_custom_call.1} parent=5 // pred_check
        _
      $region74: #{tpu_custom_call.1} parent=5 // pred_check_branch
        %629 = sbr.rel (%p626) target = $region76
      $region75: #{tpu_custom_call.1} parent=5 // pred_region
        %s630 = ssub.s32 %s23, 1
        // Predicated region
        $region77: #{tpu_custom_call.1} parent=75 // pred_check
          %p631 = pneg %p61
        $region78: #{tpu_custom_call.1} parent=75 // pred_check_branch
          %633 = sbr.rel (%p631) target = $region80
        $region79: #{tpu_custom_call.1} parent=75 // pred_region
          %634 = dma.done [#allocation3], 256
        $region80: #{tpu_custom_call.1} parent=75 // pred_fallthru
          _
        // Predicated region
        $region81: #{tpu_custom_call.1} parent=75 // pred_check
          %p635 = pneg %p87
        $region82: #{tpu_custom_call.1} parent=75 // pred_check_branch
          %637 = sbr.rel (%p635) target = $region84
        $region83: #{tpu_custom_call.1} parent=75 // pred_region
          %638 = dma.done [#allocation6], 512
        $region84: #{tpu_custom_call.1} parent=75 // pred_fallthru
          _
        %s639 = sand.u32 %s28, 1
        %s640 = scalar_lea.sflag [#allocation3], %s639
        %s641 = sand.u32 %s100, 1
        %s642 = smul.addr %s641, 64
        %s643 = scalar_lea.vmem [#allocation7], %s642
        // Predicated region
        $region85: #{tpu_custom_call.1} parent=75 // pred_check
          %p644 = pneg %p113
        $region86: #{tpu_custom_call.1} parent=75 // pred_check_branch
          %646 = sbr.rel (%p644) target = $region88
        $region87: #{tpu_custom_call.1} parent=75 // pred_region
          %647 = dma.done %s640, 1024
        $region88: #{tpu_custom_call.1} parent=75 // pred_fallthru
          _
        %s648 = sand.u32 %s28, 1
        %s649 = scalar_lea.sflag [#allocation3], %s648
        %s650 = sand.u32 %s126, 1
        %s651 = smul.addr %s650, 128
        %s652 = scalar_lea.vmem [#allocation8], %s651
        // Predicated region
        $region89: #{tpu_custom_call.1} parent=75 // pred_check
          %p653 = pneg %p139
        $region90: #{tpu_custom_call.1} parent=75 // pred_check_branch
          %655 = sbr.rel (%p653) target = $region92
        $region91: #{tpu_custom_call.1} parent=75 // pred_region
          %656 = dma.done %s649, 2048
        $region92: #{tpu_custom_call.1} parent=75 // pred_fallthru
          _
        %s657 = sand.u32 %s28, 1
        %s658 = scalar_lea.sflag [#allocation3], %s657
        %s659 = sand.u32 %s152, 1
        %s660 = smul.addr %s659, 64
        %s661 = scalar_lea.vmem [#allocation9], %s660
        // Predicated region
        $region93: #{tpu_custom_call.1} parent=75 // pred_check
          %p662 = pneg %p165
        $region94: #{tpu_custom_call.1} parent=75 // pred_check_branch
          %664 = sbr.rel (%p662) target = $region96
        $region95: #{tpu_custom_call.1} parent=75 // pred_region
          %665 = dma.done %s658, 1024
        $region96: #{tpu_custom_call.1} parent=75 // pred_fallthru
          _
        %s666 = sand.u32 %s28, 1
        %s667 = scalar_lea.sflag [#allocation3], %s666
        %s668 = sand.u32 %s256, 1
        %s669 = smul.addr %s668, 64
        %s670 = scalar_lea.vmem [#allocation10], %s669
        // Predicated region
        $region97: #{tpu_custom_call.1} parent=75 // pred_check
          %p671 = pneg %p269
        $region98: #{tpu_custom_call.1} parent=75 // pred_check_branch
          %673 = sbr.rel (%p671) target = $region100
        $region99: #{tpu_custom_call.1} parent=75 // pred_region
          %674 = dma.done %s667, 1024
        $region100: #{tpu_custom_call.1} parent=75 // pred_fallthru
          _
        %s675 = sand.u32 %s28, 1
        %s676 = scalar_lea.sflag [#allocation3], %s675
        %s677 = sand.u32 %s308, 1
        %s678 = smul.addr %s677, 64
        %s679 = scalar_lea.vmem [#allocation11], %s678
        // Predicated region
        $region101: #{tpu_custom_call.1} parent=75 // pred_check
          %p680 = pneg %p321
        $region102: #{tpu_custom_call.1} parent=75 // pred_check_branch
          %682 = sbr.rel (%p680) target = $region104
        $region103: #{tpu_custom_call.1} parent=75 // pred_region
          %683 = dma.done %s676, 1024
        $region104: #{tpu_custom_call.1} parent=75 // pred_fallthru
          _
        %p684 = pneg %p61
        %p685 = pneg %p58
        %p686 = pneg %p87
        %p687 = pneg %p84
        %s688 = sand.u32 %s28, 1
        %s689 = scalar_lea.sflag [#allocation3], %s688
        %s690 = sand.u32 %s100, 1
        %s691 = smul.addr %s690, 64
        %s692 = scalar_lea.vmem [#allocation7], %s691
        %p693 = pneg %p113
        %p694 = pneg %p110
        %s695 = sand.u32 %s28, 1
        %s696 = scalar_lea.sflag [#allocation3], %s695
        %s697 = sand.u32 %s126, 1
        %s698 = smul.addr %s697, 128
        %s699 = scalar_lea.vmem [#allocation8], %s698
        %p700 = pneg %p139
        %p701 = pneg %p136
        %s702 = sand.u32 %s28, 1
        %s703 = scalar_lea.sflag [#allocation3], %s702
        %s704 = sand.u32 %s152, 1
        %s705 = smul.addr %s704, 64
        %s706 = scalar_lea.vmem [#allocation9], %s705
        %p707 = pneg %p165
        %p708 = pneg %p162
        %p709 = scmp.lt.s32.totalorder %s33, 1
        %s710 = scalar_select %p709, %s33, 1
        %s711 = scalar_lea.vmem %s5, %s710
        %p712 = pneg %p191
        %p713 = pneg %p188
        %p714 = scmp.lt.s32.totalorder %s33, 1
        %s715 = scalar_select %p714, %s33, 1
        %s716 = scalar_lea.vmem %s6, %s715
        %p717 = pneg %p217
        %p718 = pneg %p214
        %p719 = scmp.lt.s32.totalorder %s33, 1
        %s720 = scalar_select %p719, %s33, 1
        %s721 = scalar_lea.vmem %s7, %s720
        %p722 = pneg %p243
        %p723 = pneg %p240
        %s724 = sand.u32 %s28, 1
        %s725 = scalar_lea.sflag [#allocation3], %s724
        %s726 = sand.u32 %s256, 1
        %s727 = smul.addr %s726, 64
        %s728 = scalar_lea.vmem [#allocation10], %s727
        %p729 = pneg %p269
        %p730 = pneg %p266
        %p731 = scmp.lt.s32.totalorder %s33, 1
        %s732 = scalar_select %p731, %s33, 1
        %s733 = scalar_lea.vmem %s9, %s732
        %p734 = pneg %p295
        %p735 = pneg %p292
        %s736 = sand.u32 %s28, 1
        %s737 = scalar_lea.sflag [#allocation3], %s736
        %s738 = sand.u32 %s308, 1
        %s739 = smul.addr %s738, 64
        %s740 = scalar_lea.vmem [#allocation11], %s739
        %p741 = pneg %p321
        %p742 = pneg %p318
        %p743 = scmp.lt.s32.totalorder %s33, 1
        %s744 = scalar_select %p743, %s33, 1
        %s745 = scalar_lea.vmem %s11, %s744
        %p746 = pneg %p347
        %p747 = pneg %p344
        %p748 = scmp.lt.s32.totalorder %s33, 1
        %s749 = scalar_select %p748, %s33, 1
        %s750 = scalar_lea.vmem %s12, %s749
        %p751 = pneg %p373
        %p752 = pneg %p370
        %p753 = scmp.lt.s32.totalorder %s33, 1
        %s754 = scalar_select %p753, %s33, 1
        %s755 = scalar_lea.vmem %s13, %s754
        %p756 = pneg %p399
        %p757 = pneg %p396
        %p758 = pneg %p425
        %p759 = pneg %p422
        %s760 = smul.u32 2, %s32
        %s761 = smul.u32 2, %s32
        %p762 = scmp.lt.s32.totalorder %s33, 1
        %s763 = scalar_select %p762, %s33, 1
        %s764 = scalar_lea.vmem %s5, %s763
        %p765 = scmp.lt.s32.totalorder %s33, 1
        %s766 = scalar_select %p765, %s33, 1
        %s767 = scalar_lea.vmem %s6, %s766
        %p768 = scmp.lt.s32.totalorder %s33, 1
        %s769 = scalar_select %p768, %s33, 1
        %s770 = scalar_lea.vmem %s7, %s769
        %p771 = scmp.lt.s32.totalorder %s33, 1
        %s772 = scalar_select %p771, %s33, 1
        %s773 = scalar_lea.vmem %s9, %s772
        %p774 = scmp.lt.s32.totalorder %s33, 1
        %s775 = scalar_select %p774, %s33, 1
        %s776 = scalar_lea.vmem %s11, %s775
        %p777 = scmp.lt.s32.totalorder %s33, 1
        %s778 = scalar_select %p777, %s33, 1
        %s779 = scalar_lea.vmem %s12, %s778
        %p780 = scmp.lt.s32.totalorder %s33, 1
        %s781 = scalar_select %p780, %s33, 1
        %s782 = scalar_lea.vmem %s13, %s781
        %s783 = smul.u32 2, %s32
        %p785 = scmp.eq.s32.totalorder %s33, 0
        // Predicated region
        $region105: #{tpu_custom_call.1} parent=75 // pred_check
          %p786 = pneg %p785
        $region106: #{tpu_custom_call.1} parent=75 // pred_check_branch
          %788 = sbr.rel (%p786) target = $region108
        $region107: #{tpu_custom_call.1} parent=75 // pred_region
          %v789 = vld [vmem:[#allocation2] sm:$0xff]
          %v790 = vld [vmem:[#allocation2 + $0x8] sm:$0xff]
          %791 = vst [vmem:[#allocation12] sm:$0xff] %v789
          %792 = vst [vmem:[#allocation12 + $0x8] sm:$0xff] %v790
        $region108: #{tpu_custom_call.1} parent=75 // pred_fallthru
          _
        %v793 = vld [vmem:[#allocation12] sm:$0xff]
        %v794 = vld [vmem:[#allocation12 + $0x8] sm:$0xff]
        %v795 = vld [vmem:[#allocation5] sm:$0xff]
        %v796 = vld [vmem:[#allocation5 + $0x8] sm:$0xff]
        %v797 = vld [vmem:[#allocation5 + $0x10] sm:$0xff]
        %v798 = vld [vmem:[#allocation5 + $0x18] sm:$0xff]
        %v799 = vpack.c.bf16 %v794, %v793
        %v800 = vld [vmem:[%s643] sm:$0xf]
        %v801 = vld [vmem:[%s643 + $0x4] sm:$0xf]
        %v802 = vld [vmem:[%s643 + $0x8] sm:$0xf]
        %v803 = vld [vmem:[%s643 + $0xc] sm:$0xf]
        %v804 = vld [vmem:[%s643 + $0x10] sm:$0xf]
        %v805 = vld [vmem:[%s643 + $0x14] sm:$0xf]
        %v806 = vld [vmem:[%s643 + $0x18] sm:$0xf]
        %v807 = vld [vmem:[%s643 + $0x1c] sm:$0xf]
        %v808 = vld [vmem:[%s643 + $0x20] sm:$0xf]
        %v809 = vld [vmem:[%s643 + $0x24] sm:$0xf]
        %v810 = vld [vmem:[%s643 + $0x28] sm:$0xf]
        %v811 = vld [vmem:[%s643 + $0x2c] sm:$0xf]
        %v812 = vld [vmem:[%s643 + $0x30] sm:$0xf]
        %v813 = vld [vmem:[%s643 + $0x34] sm:$0xf]
        %v814 = vld [vmem:[%s643 + $0x38] sm:$0xf]
        %v815 = vld [vmem:[%s643 + $0x3c] sm:$0xf]
        %v832 = vunpack.c.l.b16 %v800
        %v833 = vunpack.c.l.b16 %v801
        %v834 = vunpack.c.l.b16 %v802
        %v835 = vunpack.c.l.b16 %v803
        %v836 = vunpack.c.l.b16 %v804
        %v837 = vunpack.c.l.b16 %v805
        %v838 = vunpack.c.l.b16 %v806
        %v839 = vunpack.c.l.b16 %v807
        %v840 = vunpack.c.l.b16 %v808
        %v841 = vunpack.c.l.b16 %v809
        %v842 = vunpack.c.l.b16 %v810
        %v843 = vunpack.c.l.b16 %v811
        %v844 = vunpack.c.l.b16 %v812
        %v845 = vunpack.c.l.b16 %v813
        %v846 = vunpack.c.l.b16 %v814
        %v847 = vunpack.c.l.b16 %v815
        %v848 = vpack.c.b16 %v833, %v832
        %v849 = vpack.c.b16 %v835, %v834
        %v850 = vpack.c.b16 %v837, %v836
        %v851 = vpack.c.b16 %v839, %v838
        %v852 = vpack.c.b16 %v841, %v840
        %v853 = vpack.c.b16 %v843, %v842
        %v854 = vpack.c.b16 %v845, %v844
        %v855 = vpack.c.b16 %v847, %v846
        %864 = vmatprep.subr.bf16.mxu0 0
        %865 = vmatpush1.bf16.msra.mxu0 %v848
        %866 = vmatprep.subr.bf16.mxu0 0
        %867 = vmatpush1.bf16.msra.mxu0 %v849
        %868 = vmatprep.subr.bf16.mxu0 0
        %869 = vmatpush1.bf16.msra.mxu0 %v850
        %870 = vmatprep.subr.bf16.mxu0 0
        %871 = vmatpush1.bf16.msra.mxu0 %v851
        %872 = vmatprep.subr.bf16.mxu0 0
        %873 = vmatpush1.bf16.msra.mxu0 %v852
        %874 = vmatprep.subr.bf16.mxu0 0
        %875 = vmatpush1.bf16.msra.mxu0 %v853
        %876 = vmatprep.subr.bf16.mxu0 0
        %877 = vmatpush1.bf16.msra.mxu0 %v854
        %878 = vmatprep.subr.bf16.mxu0 0
        %879 = vmatpush1.bf16.msra.mxu0 %v855
        %880 = vmatprep.subr.bf16.mxu0 0
        %881 = vmatpush1.bf16.msra.mxu0 0
        %882 = vmatprep.subr.bf16.mxu0 0
        %883 = vmatpush1.bf16.msra.mxu0 0
        %884 = vmatprep.subr.bf16.mxu0 0
        %885 = vmatpush1.bf16.msra.mxu0 0
        %886 = vmatprep.subr.bf16.mxu0 0
        %887 = vmatpush1.bf16.msra.mxu0 0
        %888 = vmatprep.subr.bf16.mxu0 0
        %889 = vmatpush1.bf16.msra.mxu0 0
        %890 = vmatprep.subr.bf16.mxu0 0
        %891 = vmatpush1.bf16.msra.mxu0 0
        %892 = vmatprep.subr.bf16.mxu0 0
        %893 = vmatpush1.bf16.msra.mxu0 0
        %894 = vmatprep.subr.bf16.mxu0 0
        %895 = vmatpush1.bf16.msra.mxu0 0
        %896 = vmatprep.mubr.bf16.mxu0 0
        %897 = vmatmul.mubr.bf16.gmra.mrb[0].mxu0 %v799
        %v898 = vpop.f32.mrb[0].mxu0
        %v899 = vadd.f32 0.0, %v898
        %v900 = vpop.f32.mrb[0].mxu0
        %v901 = vpop.f32.mrb[0].mxu0
        %v902 = vadd.f32 0.0, %v901
        %v903 = vpop.f32.mrb[0].mxu0
        %904 = vdwg.mxu0
        %v905 = vpack.c.bf16 %v796, %v795
        %v906 = vpack.c.bf16 %v798, %v797
        %v907 = vld [vmem:[%s652] sm:$0xff]
        %v908 = vld [vmem:[%s652 + $0x8] sm:$0xff]
        %v909 = vld [vmem:[%s652 + $0x10] sm:$0xff]
        %v910 = vld [vmem:[%s652 + $0x18] sm:$0xff]
        %v911 = vld [vmem:[%s652 + $0x20] sm:$0xff]
        %v912 = vld [vmem:[%s652 + $0x28] sm:$0xff]
        %v913 = vld [vmem:[%s652 + $0x30] sm:$0xff]
        %v914 = vld [vmem:[%s652 + $0x38] sm:$0xff]
        %v915 = vld [vmem:[%s652 + $0x40] sm:$0xff]
        %v916 = vld [vmem:[%s652 + $0x48] sm:$0xff]
        %v917 = vld [vmem:[%s652 + $0x50] sm:$0xff]
        %v918 = vld [vmem:[%s652 + $0x58] sm:$0xff]
        %v919 = vld [vmem:[%s652 + $0x60] sm:$0xff]
        %v920 = vld [vmem:[%s652 + $0x68] sm:$0xff]
        %v921 = vld [vmem:[%s652 + $0x70] sm:$0xff]
        %v922 = vld [vmem:[%s652 + $0x78] sm:$0xff]
        %v939 = vunpack.c.l.b16 %v907
        %v940 = vunpack.c.h.b16 %v907
        %v941 = vunpack.c.l.b16 %v908
        %v942 = vunpack.c.h.b16 %v908
        %v943 = vunpack.c.l.b16 %v909
        %v944 = vunpack.c.h.b16 %v909
        %v945 = vunpack.c.l.b16 %v910
        %v946 = vunpack.c.h.b16 %v910
        %v947 = vunpack.c.l.b16 %v911
        %v948 = vunpack.c.h.b16 %v911
        %v949 = vunpack.c.l.b16 %v912
        %v950 = vunpack.c.h.b16 %v912
        %v951 = vunpack.c.l.b16 %v913
        %v952 = vunpack.c.h.b16 %v913
        %v953 = vunpack.c.l.b16 %v914
        %v954 = vunpack.c.h.b16 %v914
        %v955 = vunpack.c.l.b16 %v915
        %v956 = vunpack.c.h.b16 %v915
        %v957 = vunpack.c.l.b16 %v916
        %v958 = vunpack.c.h.b16 %v916
        %v959 = vunpack.c.l.b16 %v917
        %v960 = vunpack.c.h.b16 %v917
        %v961 = vunpack.c.l.b16 %v918
        %v962 = vunpack.c.h.b16 %v918
        %v963 = vunpack.c.l.b16 %v919
        %v964 = vunpack.c.h.b16 %v919
        %v965 = vunpack.c.l.b16 %v920
        %v966 = vunpack.c.h.b16 %v920
        %v967 = vunpack.c.l.b16 %v921
        %v968 = vunpack.c.h.b16 %v921
        %v969 = vunpack.c.l.b16 %v922
        %v970 = vunpack.c.h.b16 %v922
        %v971 = vpack.c.b16 %v941, %v939
        %v972 = vpack.c.b16 %v942, %v940
        %v973 = vpack.c.b16 %v945, %v943
        %v974 = vpack.c.b16 %v946, %v944
        %v975 = vpack.c.b16 %v949, %v947
        %v976 = vpack.c.b16 %v950, %v948
        %v977 = vpack.c.b16 %v953, %v951
        %v978 = vpack.c.b16 %v954, %v952
        %v979 = vpack.c.b16 %v957, %v955
        %v980 = vpack.c.b16 %v958, %v956
        %v981 = vpack.c.b16 %v961, %v959
        %v982 = vpack.c.b16 %v962, %v960
        %v983 = vpack.c.b16 %v965, %v963
        %v984 = vpack.c.b16 %v966, %v964
        %v985 = vpack.c.b16 %v969, %v967
        %v986 = vpack.c.b16 %v970, %v968
        %1003 = vmatprep.subr.bf16.mxu0 %v972
        %1004 = vmatpush1.bf16.msra.mxu0 %v971
        %1005 = vmatprep.subr.bf16.mxu0 %v974
        %1006 = vmatpush1.bf16.msra.mxu0 %v973
        %1007 = vmatprep.subr.bf16.mxu0 %v976
        %1008 = vmatpush1.bf16.msra.mxu0 %v975
        %1009 = vmatprep.subr.bf16.mxu0 %v978
        %1010 = vmatpush1.bf16.msra.mxu0 %v977
        %1011 = vmatprep.subr.bf16.mxu0 %v980
        %1012 = vmatpush1.bf16.msra.mxu0 %v979
        %1013 = vmatprep.subr.bf16.mxu0 %v982
        %1014 = vmatpush1.bf16.msra.mxu0 %v981
        %1015 = vmatprep.subr.bf16.mxu0 %v984
        %1016 = vmatpush1.bf16.msra.mxu0 %v983
        %1017 = vmatprep.subr.bf16.mxu0 %v986
        %1018 = vmatpush1.bf16.msra.mxu0 %v985
        %1019 = vmatprep.subr.bf16.mxu0 0
        %1020 = vmatpush1.bf16.msra.mxu0 0
        %1021 = vmatprep.subr.bf16.mxu0 0
        %1022 = vmatpush1.bf16.msra.mxu0 0
        %1023 = vmatprep.subr.bf16.mxu0 0
        %1024 = vmatpush1.bf16.msra.mxu0 0
        %1025 = vmatprep.subr.bf16.mxu0 0
        %1026 = vmatpush1.bf16.msra.mxu0 0
        %1027 = vmatprep.subr.bf16.mxu0 0
        %1028 = vmatpush1.bf16.msra.mxu0 0
        %1029 = vmatprep.subr.bf16.mxu0 0
        %1030 = vmatpush1.bf16.msra.mxu0 0
        %1031 = vmatprep.subr.bf16.mxu0 0
        %1032 = vmatpush1.bf16.msra.mxu0 0
        %1033 = vmatprep.subr.bf16.mxu0 0
        %1034 = vmatpush1.bf16.msra.mxu0 0
        %1035 = vmatprep.mubr.bf16.mxu0 0
        %1036 = vmatmul.mubr.bf16.gmra.mrb[0].mxu0 %v905
        %v1037 = vpop.f32.mrb[0].mxu0
        %v1038 = vadd.f32 0.0, %v1037
        %v1039 = vpop.f32.mrb[0].mxu0
        %v1040 = vadd.f32 0.0, %v1039
        %v1041 = vpop.f32.mrb[0].mxu0
        %v1042 = vadd.f32 0.0, %v1041
        %v1043 = vpop.f32.mrb[0].mxu0
        %v1044 = vadd.f32 0.0, %v1043
        %1045 = vmatprep.mubr.bf16.mxu0 0
        %1046 = vmatmul.mubr.bf16.gmra.mrb[0].mxu0 %v906
        %v1047 = vpop.f32.mrb[0].mxu0
        %v1048 = vadd.f32 0.0, %v1047
        %v1049 = vpop.f32.mrb[0].mxu0
        %v1050 = vadd.f32 0.0, %v1049
        %v1051 = vpop.f32.mrb[0].mxu0
        %v1052 = vadd.f32 0.0, %v1051
        %v1053 = vpop.f32.mrb[0].mxu0
        %v1054 = vadd.f32 0.0, %v1053
        %1055 = vdwg.mxu0
        %v1056 = vpack.c.bf16 %v902, %v899
        %v1057 = vpack.c.bf16 %v1042, %v1038
        %v1058 = vpack.c.bf16 %v1052, %v1048
        %v1059 = vpack.c.bf16 %v1044, %v1040
        %v1060 = vpack.c.bf16 %v1054, %v1050
        %v1062 = vunpack.c.l.b16 %v1056
        %v1063 = vunpack.c.h.b16 %v1056
        %v1064 = vpack.c.b16 %v1062, %v1062
        %v1065 = vpack.c.b16 %v1063, %v1063
        %vm1066 = vcmask 261120
        %v1068 = vsel %vm1066, %v1064, 0
        %v1071 = vsel %vm1066, %v1057, 0
        %1073 = vmatprep.subr.bf16.mxu0 0
        %1074 = vmatpush1.bf16.xpose.msra.mxu0 %v1071
        %1075 = vmatprep.subr.bf16.mxu0 0
        %1076 = vmatpush1.bf16.xpose.msra.mxu0 0
        %1077 = vmatprep.subr.bf16.mxu0 0
        %1078 = vmatpush1.bf16.xpose.msra.mxu0 0
        %1079 = vmatprep.subr.bf16.mxu0 0
        %1080 = vmatpush1.bf16.xpose.msra.mxu0 0
        %1081 = vmatprep.subr.bf16.mxu0 0
        %1082 = vmatpush1.bf16.xpose.msra.mxu0 0
        %1083 = vmatprep.subr.bf16.mxu0 0
        %1084 = vmatpush1.bf16.xpose.msra.mxu0 0
        %1085 = vmatprep.subr.bf16.mxu0 0
        %1086 = vmatpush1.bf16.xpose.msra.mxu0 0
        %1087 = vmatprep.subr.bf16.mxu0 0
        %1088 = vmatpush1.bf16.xpose.msra.mxu0 0
        %1089 = vmatprep.subr.bf16.mxu0 0
        %1090 = vmatpush1.bf16.xpose.msra.mxu0 0
        %1091 = vmatprep.subr.bf16.mxu0 0
        %1092 = vmatpush1.bf16.xpose.msra.mxu0 0
        %1093 = vmatprep.subr.bf16.mxu0 0
        %1094 = vmatpush1.bf16.xpose.msra.mxu0 0
        %1095 = vmatprep.subr.bf16.mxu0 0
        %1096 = vmatpush1.bf16.xpose.msra.mxu0 0
        %1097 = vmatprep.subr.bf16.mxu0 0
        %1098 = vmatpush1.bf16.xpose.msra.mxu0 0
        %1099 = vmatprep.subr.bf16.mxu0 0
        %1100 = vmatpush1.bf16.xpose.msra.mxu0 0
        %1101 = vmatprep.subr.bf16.mxu0 0
        %1102 = vmatpush1.bf16.xpose.msra.mxu0 0
        %1103 = vmatprep.subr.bf16.mxu0 0
        %1104 = vmatpush1.bf16.xpose.msra.mxu0 0
        %1105 = vmatprep.mubr.bf16.mxu0 0
        %1106 = vmatmul.mubr.bf16.gmra.mrb[0].mxu0 %v1068
        %v1107 = vpop.f32.mrb[0].mxu0
        %v1108 = vadd.f32 0.0, %v1107
        %v1109 = vpop.f32.mrb[0].mxu0
        %v1110 = vpop.f32.mrb[0].mxu0
        %v1111 = vpop.f32.mrb[0].mxu0
        %1112 = vdwg.mxu0
        %v1114 = vsel %vm1066, %v1065, 0
        %v1117 = vsel %vm1066, %v1058, 0
        %1119 = vmatprep.subr.bf16.mxu0 0
        %1120 = vmatpush1.bf16.xpose.msra.mxu0 %v1117
        %1121 = vmatprep.subr.bf16.mxu0 0
        %1122 = vmatpush1.bf16.xpose.msra.mxu0 0
        %1123 = vmatprep.subr.bf16.mxu0 0
        %1124 = vmatpush1.bf16.xpose.msra.mxu0 0
        %1125 = vmatprep.subr.bf16.mxu0 0
        %1126 = vmatpush1.bf16.xpose.msra.mxu0 0
        %1127 = vmatprep.subr.bf16.mxu0 0
        %1128 = vmatpush1.bf16.xpose.msra.mxu0 0
        %1129 = vmatprep.subr.bf16.mxu0 0
        %1130 = vmatpush1.bf16.xpose.msra.mxu0 0
        %1131 = vmatprep.subr.bf16.mxu0 0
        %1132 = vmatpush1.bf16.xpose.msra.mxu0 0
        %1133 = vmatprep.subr.bf16.mxu0 0
        %1134 = vmatpush1.bf16.xpose.msra.mxu0 0
        %1135 = vmatprep.subr.bf16.mxu0 0
        %1136 = vmatpush1.bf16.xpose.msra.mxu0 0
        %1137 = vmatprep.subr.bf16.mxu0 0
        %1138 = vmatpush1.bf16.xpose.msra.mxu0 0
        %1139 = vmatprep.subr.bf16.mxu0 0
        %1140 = vmatpush1.bf16.xpose.msra.mxu0 0
        %1141 = vmatprep.subr.bf16.mxu0 0
        %1142 = vmatpush1.bf16.xpose.msra.mxu0 0
        %1143 = vmatprep.subr.bf16.mxu0 0
        %1144 = vmatpush1.bf16.xpose.msra.mxu0 0
        %1145 = vmatprep.subr.bf16.mxu0 0
        %1146 = vmatpush1.bf16.xpose.msra.mxu0 0
        %1147 = vmatprep.subr.bf16.mxu0 0
        %1148 = vmatpush1.bf16.xpose.msra.mxu0 0
        %1149 = vmatprep.subr.bf16.mxu0 0
        %1150 = vmatpush1.bf16.xpose.msra.mxu0 0
        %1151 = vmatprep.mubr.bf16.mxu0 0
        %1152 = vmatmul.mubr.bf16.gmra.mrb[0].mxu0 %v1114
        %v1153 = vpop.f32.mrb[0].mxu0
        %v1154 = vadd.f32 0.0, %v1153
        %v1155 = vpop.f32.mrb[0].mxu0
        %v1156 = vpop.f32.mrb[0].mxu0
        %v1157 = vpop.f32.mrb[0].mxu0
        %1158 = vdwg.mxu0
        %vm1159 = vcmask 130048
        %v1160 = vsel %vm1159, %v1108, -inf
        %1161 = vmax.xlane.f32.xlu0 %v1160
        %v1162 = vpop.xlane.xlu0 %1161
        %v1163 = vsel %vm1159, %v1154, -inf
        %1164 = vmax.xlane.f32.xlu0 %v1163
        %v1165 = vpop.xlane.xlu0 %1164
        %v1166 = vsub.f32 %v1108, %v1162
        %v1167 = vsub.f32 %v1154, %v1165
        %v1168 = vmul.f32 %v1166, 1.442695
        %v1169 = vpow.pop %v1168
        %v1170 = vmul.f32 %v1167, 1.442695
        %v1171 = vpow.pop %v1170
        %v1172 = vsel %vm1159, %v1169, 0.0
        %1173 = vadd.xlane.f32.xlu0 %v1172
        %v1174 = vpop.xlane.xlu0 %1173
        %v1175 = vsel %vm1159, %v1171, 0.0
        %1176 = vadd.xlane.f32.xlu0 %v1175
        %v1177 = vpop.xlane.xlu0 %1176
        %v1178 = vrcp.pop %v1174
        %v1179 = vrcp.pop %v1177
        %v1180 = vmul.f32 %v1169, %v1178
        %v1181 = vmul.f32 %v1171, %v1179
        %v1182 = vpack.c.bf16 %v1180, %v1180
        %v1183 = vpack.c.bf16 %v1181, %v1181
        %v1185 = vsel %vm1159, %v1182, 0
        %1187 = vmatprep.subr.bf16.mxu0 0
        %1188 = vmatpush1.bf16.msra.mxu0 %v1059
        %1189 = vmatprep.subr.bf16.mxu0 0
        %1190 = vmatpush1.bf16.msra.mxu0 0
        %1191 = vmatprep.subr.bf16.mxu0 0
        %1192 = vmatpush1.bf16.msra.mxu0 0
        %1193 = vmatprep.subr.bf16.mxu0 0
        %1194 = vmatpush1.bf16.msra.mxu0 0
        %1195 = vmatprep.subr.bf16.mxu0 0
        %1196 = vmatpush1.bf16.msra.mxu0 0
        %1197 = vmatprep.subr.bf16.mxu0 0
        %1198 = vmatpush1.bf16.msra.mxu0 0
        %1199 = vmatprep.subr.bf16.mxu0 0
        %1200 = vmatpush1.bf16.msra.mxu0 0
        %1201 = vmatprep.subr.bf16.mxu0 0
        %1202 = vmatpush1.bf16.msra.mxu0 0
        %1203 = vmatprep.subr.bf16.mxu0 0
        %1204 = vmatpush1.bf16.msra.mxu0 0
        %1205 = vmatprep.subr.bf16.mxu0 0
        %1206 = vmatpush1.bf16.msra.mxu0 0
        %1207 = vmatprep.subr.bf16.mxu0 0
        %1208 = vmatpush1.bf16.msra.mxu0 0
        %1209 = vmatprep.subr.bf16.mxu0 0
        %1210 = vmatpush1.bf16.msra.mxu0 0
        %1211 = vmatprep.subr.bf16.mxu0 0
        %1212 = vmatpush1.bf16.msra.mxu0 0
        %1213 = vmatprep.subr.bf16.mxu0 0
        %1214 = vmatpush1.bf16.msra.mxu0 0
        %1215 = vmatprep.subr.bf16.mxu0 0
        %1216 = vmatpush1.bf16.msra.mxu0 0
        %1217 = vmatprep.subr.bf16.mxu0 0
        %1218 = vmatpush1.bf16.msra.mxu0 0
        %1219 = vmatprep.mubr.bf16.mxu0 0
        %1220 = vmatmul.mubr.bf16.gmra.mrb[0].mxu0 %v1185
        %v1221 = vpop.f32.mrb[0].mxu0
        %v1222 = vadd.f32 0.0, %v1221
        %v1223 = vpop.f32.mrb[0].mxu0
        %v1224 = vpop.f32.mrb[0].mxu0
        %v1225 = vpop.f32.mrb[0].mxu0
        %1226 = vdwg.mxu0
        %v1228 = vsel %vm1159, %v1183, 0
        %1230 = vmatprep.subr.bf16.mxu0 0
        %1231 = vmatpush1.bf16.msra.mxu0 %v1060
        %1232 = vmatprep.subr.bf16.mxu0 0
        %1233 = vmatpush1.bf16.msra.mxu0 0
        %1234 = vmatprep.subr.bf16.mxu0 0
        %1235 = vmatpush1.bf16.msra.mxu0 0
        %1236 = vmatprep.subr.bf16.mxu0 0
        %1237 = vmatpush1.bf16.msra.mxu0 0
        %1238 = vmatprep.subr.bf16.mxu0 0
        %1239 = vmatpush1.bf16.msra.mxu0 0
        %1240 = vmatprep.subr.bf16.mxu0 0
        %1241 = vmatpush1.bf16.msra.mxu0 0
        %1242 = vmatprep.subr.bf16.mxu0 0
        %1243 = vmatpush1.bf16.msra.mxu0 0
        %1244 = vmatprep.subr.bf16.mxu0 0
        %1245 = vmatpush1.bf16.msra.mxu0 0
        %1246 = vmatprep.subr.bf16.mxu0 0
        %1247 = vmatpush1.bf16.msra.mxu0 0
        %1248 = vmatprep.subr.bf16.mxu0 0
        %1249 = vmatpush1.bf16.msra.mxu0 0
        %1250 = vmatprep.subr.bf16.mxu0 0
        %1251 = vmatpush1.bf16.msra.mxu0 0
        %1252 = vmatprep.subr.bf16.mxu0 0
        %1253 = vmatpush1.bf16.msra.mxu0 0
        %1254 = vmatprep.subr.bf16.mxu0 0
        %1255 = vmatpush1.bf16.msra.mxu0 0
        %1256 = vmatprep.subr.bf16.mxu0 0
        %1257 = vmatpush1.bf16.msra.mxu0 0
        %1258 = vmatprep.subr.bf16.mxu0 0
        %1259 = vmatpush1.bf16.msra.mxu0 0
        %1260 = vmatprep.subr.bf16.mxu0 0
        %1261 = vmatpush1.bf16.msra.mxu0 0
        %1262 = vmatprep.mubr.bf16.mxu0 0
        %1263 = vmatmul.mubr.bf16.gmra.mrb[0].mxu0 %v1228
        %v1264 = vpop.f32.mrb[0].mxu0
        %v1265 = vadd.f32 0.0, %v1264
        %v1266 = vpop.f32.mrb[0].mxu0
        %v1267 = vpop.f32.mrb[0].mxu0
        %v1268 = vpop.f32.mrb[0].mxu0
        %1269 = vdwg.mxu0
        %v1270 = vpack.c.bf16 %v1265, %v1222
        %v1271 = vld [vmem:[%s661] sm:$0xf]
        %v1272 = vld [vmem:[%s661 + $0x4] sm:$0xf]
        %v1273 = vld [vmem:[%s661 + $0x8] sm:$0xf]
        %v1274 = vld [vmem:[%s661 + $0xc] sm:$0xf]
        %1275 = vrot.lane.b32.xlu0 %v1064, 96
        %v1276 = vpop.permute.xlu0 %1275
        %1278 = vrot.lane.b32.xlu0 %v1057, 96
        %v1279 = vpop.permute.xlu0 %1278
        %v1281 = vsel %vm1066, %v1276, 0
        %v1284 = vsel %vm1066, %v1279, 0
        %1286 = vmatprep.subr.bf16.mxu0 0
        %1287 = vmatpush1.bf16.xpose.msra.mxu0 %v1284
        %1288 = vmatprep.subr.bf16.mxu0 0
        %1289 = vmatpush1.bf16.xpose.msra.mxu0 0
        %1290 = vmatprep.subr.bf16.mxu0 0
        %1291 = vmatpush1.bf16.xpose.msra.mxu0 0
        %1292 = vmatprep.subr.bf16.mxu0 0
        %1293 = vmatpush1.bf16.xpose.msra.mxu0 0
        %1294 = vmatprep.subr.bf16.mxu0 0
        %1295 = vmatpush1.bf16.xpose.msra.mxu0 0
        %1296 = vmatprep.subr.bf16.mxu0 0
        %1297 = vmatpush1.bf16.xpose.msra.mxu0 0
        %1298 = vmatprep.subr.bf16.mxu0 0
        %1299 = vmatpush1.bf16.xpose.msra.mxu0 0
        %1300 = vmatprep.subr.bf16.mxu0 0
        %1301 = vmatpush1.bf16.xpose.msra.mxu0 0
        %1302 = vmatprep.subr.bf16.mxu0 0
        %1303 = vmatpush1.bf16.xpose.msra.mxu0 0
        %1304 = vmatprep.subr.bf16.mxu0 0
        %1305 = vmatpush1.bf16.xpose.msra.mxu0 0
        %1306 = vmatprep.subr.bf16.mxu0 0
        %1307 = vmatpush1.bf16.xpose.msra.mxu0 0
        %1308 = vmatprep.subr.bf16.mxu0 0
        %1309 = vmatpush1.bf16.xpose.msra.mxu0 0
        %1310 = vmatprep.subr.bf16.mxu0 0
        %1311 = vmatpush1.bf16.xpose.msra.mxu0 0
        %1312 = vmatprep.subr.bf16.mxu0 0
        %1313 = vmatpush1.bf16.xpose.msra.mxu0 0
        %1314 = vmatprep.subr.bf16.mxu0 0
        %1315 = vmatpush1.bf16.xpose.msra.mxu0 0
        %1316 = vmatprep.subr.bf16.mxu0 0
        %1317 = vmatpush1.bf16.xpose.msra.mxu0 0
        %1318 = vmatprep.mubr.bf16.mxu0 0
        %1319 = vmatmul.mubr.bf16.gmra.mrb[0].mxu0 %v1281
        %v1320 = vpop.f32.mrb[0].mxu0
        %v1321 = vadd.f32 0.0, %v1320
        %v1322 = vpop.f32.mrb[0].mxu0
        %v1323 = vpop.f32.mrb[0].mxu0
        %v1324 = vpop.f32.mrb[0].mxu0
        %1325 = vdwg.mxu0
        %1326 = vrot.lane.b32.xlu0 %v1065, 96
        %v1327 = vpop.permute.xlu0 %1326
        %1329 = vrot.lane.b32.xlu0 %v1058, 96
        %v1330 = vpop.permute.xlu0 %1329
        %v1332 = vsel %vm1066, %v1327, 0
        %v1335 = vsel %vm1066, %v1330, 0
        %1337 = vmatprep.subr.bf16.mxu0 0
        %1338 = vmatpush1.bf16.xpose.msra.mxu0 %v1335
        %1339 = vmatprep.subr.bf16.mxu0 0
        %1340 = vmatpush1.bf16.xpose.msra.mxu0 0
        %1341 = vmatprep.subr.bf16.mxu0 0
        %1342 = vmatpush1.bf16.xpose.msra.mxu0 0
        %1343 = vmatprep.subr.bf16.mxu0 0
        %1344 = vmatpush1.bf16.xpose.msra.mxu0 0
        %1345 = vmatprep.subr.bf16.mxu0 0
        %1346 = vmatpush1.bf16.xpose.msra.mxu0 0
        %1347 = vmatprep.subr.bf16.mxu0 0
        %1348 = vmatpush1.bf16.xpose.msra.mxu0 0
        %1349 = vmatprep.subr.bf16.mxu0 0
        %1350 = vmatpush1.bf16.xpose.msra.mxu0 0
        %1351 = vmatprep.subr.bf16.mxu0 0
        %1352 = vmatpush1.bf16.xpose.msra.mxu0 0
        %1353 = vmatprep.subr.bf16.mxu0 0
        %1354 = vmatpush1.bf16.xpose.msra.mxu0 0
        %1355 = vmatprep.subr.bf16.mxu0 0
        %1356 = vmatpush1.bf16.xpose.msra.mxu0 0
        %1357 = vmatprep.subr.bf16.mxu0 0
        %1358 = vmatpush1.bf16.xpose.msra.mxu0 0
        %1359 = vmatprep.subr.bf16.mxu0 0
        %1360 = vmatpush1.bf16.xpose.msra.mxu0 0
        %1361 = vmatprep.subr.bf16.mxu0 0
        %1362 = vmatpush1.bf16.xpose.msra.mxu0 0
        %1363 = vmatprep.subr.bf16.mxu0 0
        %1364 = vmatpush1.bf16.xpose.msra.mxu0 0
        %1365 = vmatprep.subr.bf16.mxu0 0
        %1366 = vmatpush1.bf16.xpose.msra.mxu0 0
        %1367 = vmatprep.subr.bf16.mxu0 0
        %1368 = vmatpush1.bf16.xpose.msra.mxu0 0
        %1369 = vmatprep.mubr.bf16.mxu0 0
        %1370 = vmatmul.mubr.bf16.gmra.mrb[0].mxu0 %v1332
        %v1371 = vpop.f32.mrb[0].mxu0
        %v1372 = vadd.f32 0.0, %v1371
        %v1373 = vpop.f32.mrb[0].mxu0
        %v1374 = vpop.f32.mrb[0].mxu0
        %v1375 = vpop.f32.mrb[0].mxu0
        %1376 = vdwg.mxu0
        %v1377 = vsel %vm1159, %v1321, -inf
        %1378 = vmax.xlane.f32.xlu0 %v1377
        %v1379 = vpop.xlane.xlu0 %1378
        %v1380 = vsel %vm1159, %v1372, -inf
        %1381 = vmax.xlane.f32.xlu0 %v1380
        %v1382 = vpop.xlane.xlu0 %1381
        %v1383 = vsub.f32 %v1321, %v1379
        %v1384 = vsub.f32 %v1372, %v1382
        %v1385 = vmul.f32 %v1383, 1.442695
        %v1386 = vpow.pop %v1385
        %v1387 = vmul.f32 %v1384, 1.442695
        %v1388 = vpow.pop %v1387
        %v1389 = vsel %vm1159, %v1386, 0.0
        %1390 = vadd.xlane.f32.xlu0 %v1389
        %v1391 = vpop.xlane.xlu0 %1390
        %v1392 = vsel %vm1159, %v1388, 0.0
        %1393 = vadd.xlane.f32.xlu0 %v1392
        %v1394 = vpop.xlane.xlu0 %1393
        %v1395 = vrcp.pop %v1391
        %v1396 = vrcp.pop %v1394
        %v1397 = vmul.f32 %v1386, %v1395
        %v1398 = vmul.f32 %v1388, %v1396
        %v1399 = vpack.c.bf16 %v1397, %v1397
        %v1400 = vpack.c.bf16 %v1398, %v1398
        %1402 = vrot.lane.b32.xlu0 %v1059, 96
        %v1403 = vpop.permute.xlu0 %1402
        %v1406 = vsel %vm1159, %v1399, 0
        %1408 = vmatprep.subr.bf16.mxu0 0
        %1409 = vmatpush1.bf16.msra.mxu0 %v1403
        %1410 = vmatprep.subr.bf16.mxu0 0
        %1411 = vmatpush1.bf16.msra.mxu0 0
        %1412 = vmatprep.subr.bf16.mxu0 0
        %1413 = vmatpush1.bf16.msra.mxu0 0
        %1414 = vmatprep.subr.bf16.mxu0 0
        %1415 = vmatpush1.bf16.msra.mxu0 0
        %1416 = vmatprep.subr.bf16.mxu0 0
        %1417 = vmatpush1.bf16.msra.mxu0 0
        %1418 = vmatprep.subr.bf16.mxu0 0
        %1419 = vmatpush1.bf16.msra.mxu0 0
        %1420 = vmatprep.subr.bf16.mxu0 0
        %1421 = vmatpush1.bf16.msra.mxu0 0
        %1422 = vmatprep.subr.bf16.mxu0 0
        %1423 = vmatpush1.bf16.msra.mxu0 0
        %1424 = vmatprep.subr.bf16.mxu0 0
        %1425 = vmatpush1.bf16.msra.mxu0 0
        %1426 = vmatprep.subr.bf16.mxu0 0
        %1427 = vmatpush1.bf16.msra.mxu0 0
        %1428 = vmatprep.subr.bf16.mxu0 0
        %1429 = vmatpush1.bf16.msra.mxu0 0
        %1430 = vmatprep.subr.bf16.mxu0 0
        %1431 = vmatpush1.bf16.msra.mxu0 0
        %1432 = vmatprep.subr.bf16.mxu0 0
        %1433 = vmatpush1.bf16.msra.mxu0 0
        %1434 = vmatprep.subr.bf16.mxu0 0
        %1435 = vmatpush1.bf16.msra.mxu0 0
        %1436 = vmatprep.subr.bf16.mxu0 0
        %1437 = vmatpush1.bf16.msra.mxu0 0
        %1438 = vmatprep.subr.bf16.mxu0 0
        %1439 = vmatpush1.bf16.msra.mxu0 0
        %1440 = vmatprep.mubr.bf16.mxu0 0
        %1441 = vmatmul.mubr.bf16.gmra.mrb[0].mxu0 %v1406
        %v1442 = vpop.f32.mrb[0].mxu0
        %v1443 = vadd.f32 0.0, %v1442
        %v1444 = vpop.f32.mrb[0].mxu0
        %v1445 = vpop.f32.mrb[0].mxu0
        %v1446 = vpop.f32.mrb[0].mxu0
        %1447 = vdwg.mxu0
        %1449 = vrot.lane.b32.xlu0 %v1060, 96
        %v1450 = vpop.permute.xlu0 %1449
        %v1453 = vsel %vm1159, %v1400, 0
        %1455 = vmatprep.subr.bf16.mxu0 0
        %1456 = vmatpush1.bf16.msra.mxu0 %v1450
        %1457 = vmatprep.subr.bf16.mxu0 0
        %1458 = vmatpush1.bf16.msra.mxu0 0
        %1459 = vmatprep.subr.bf16.mxu0 0
        %1460 = vmatpush1.bf16.msra.mxu0 0
        %1461 = vmatprep.subr.bf16.mxu0 0
        %1462 = vmatpush1.bf16.msra.mxu0 0
        %1463 = vmatprep.subr.bf16.mxu0 0
        %1464 = vmatpush1.bf16.msra.mxu0 0
        %1465 = vmatprep.subr.bf16.mxu0 0
        %1466 = vmatpush1.bf16.msra.mxu0 0
        %1467 = vmatprep.subr.bf16.mxu0 0
        %1468 = vmatpush1.bf16.msra.mxu0 0
        %1469 = vmatprep.subr.bf16.mxu0 0
        %1470 = vmatpush1.bf16.msra.mxu0 0
        %1471 = vmatprep.subr.bf16.mxu0 0
        %1472 = vmatpush1.bf16.msra.mxu0 0
        %1473 = vmatprep.subr.bf16.mxu0 0
        %1474 = vmatpush1.bf16.msra.mxu0 0
        %1475 = vmatprep.subr.bf16.mxu0 0
        %1476 = vmatpush1.bf16.msra.mxu0 0
        %1477 = vmatprep.subr.bf16.mxu0 0
        %1478 = vmatpush1.bf16.msra.mxu0 0
        %1479 = vmatprep.subr.bf16.mxu0 0
        %1480 = vmatpush1.bf16.msra.mxu0 0
        %1481 = vmatprep.subr.bf16.mxu0 0
        %1482 = vmatpush1.bf16.msra.mxu0 0
        %1483 = vmatprep.subr.bf16.mxu0 0
        %1484 = vmatpush1.bf16.msra.mxu0 0
        %1485 = vmatprep.subr.bf16.mxu0 0
        %1486 = vmatpush1.bf16.msra.mxu0 0
        %1487 = vmatprep.mubr.bf16.mxu0 0
        %1488 = vmatmul.mubr.bf16.gmra.mrb[0].mxu0 %v1453
        %v1489 = vpop.f32.mrb[0].mxu0
        %v1490 = vadd.f32 0.0, %v1489
        %v1491 = vpop.f32.mrb[0].mxu0
        %v1492 = vpop.f32.mrb[0].mxu0
        %v1493 = vpop.f32.mrb[0].mxu0
        %1494 = vdwg.mxu0
        %v1495 = vpack.c.bf16 %v1490, %v1443
        %v1496 = vld [vmem:[%s661 + $0x10] sm:$0xf]
        %v1497 = vld [vmem:[%s661 + $0x14] sm:$0xf]
        %v1498 = vld [vmem:[%s661 + $0x18] sm:$0xf]
        %v1499 = vld [vmem:[%s661 + $0x1c] sm:$0xf]
        %v1504 = vunpack.c.l.b16 %v1496
        %v1505 = vunpack.c.l.b16 %v1497
        %v1506 = vunpack.c.l.b16 %v1498
        %v1507 = vunpack.c.l.b16 %v1499
        %v1508 = vpack.c.b16 %v1505, %v1504
        %v1509 = vpack.c.b16 %v1507, %v1506
        %v1513 = vsel %vm1066, %v1495, 0
        %1515 = vmatprep.subr.bf16.mxu0 0
        %1516 = vmatpush1.bf16.msra.mxu0 %v1508
        %1517 = vmatprep.subr.bf16.mxu0 0
        %1518 = vmatpush1.bf16.msra.mxu0 %v1509
        %1519 = vmatprep.subr.bf16.mxu0 0
        %1520 = vmatpush1.bf16.msra.mxu0 0
        %1521 = vmatprep.subr.bf16.mxu0 0
        %1522 = vmatpush1.bf16.msra.mxu0 0
        %1523 = vmatprep.subr.bf16.mxu0 0
        %1524 = vmatpush1.bf16.msra.mxu0 0
        %1525 = vmatprep.subr.bf16.mxu0 0
        %1526 = vmatpush1.bf16.msra.mxu0 0
        %1527 = vmatprep.subr.bf16.mxu0 0
        %1528 = vmatpush1.bf16.msra.mxu0 0
        %1529 = vmatprep.subr.bf16.mxu0 0
        %1530 = vmatpush1.bf16.msra.mxu0 0
        %1531 = vmatprep.subr.bf16.mxu0 0
        %1532 = vmatpush1.bf16.msra.mxu0 0
        %1533 = vmatprep.subr.bf16.mxu0 0
        %1534 = vmatpush1.bf16.msra.mxu0 0
        %1535 = vmatprep.subr.bf16.mxu0 0
        %1536 = vmatpush1.bf16.msra.mxu0 0
        %1537 = vmatprep.subr.bf16.mxu0 0
        %1538 = vmatpush1.bf16.msra.mxu0 0
        %1539 = vmatprep.subr.bf16.mxu0 0
        %1540 = vmatpush1.bf16.msra.mxu0 0
        %1541 = vmatprep.subr.bf16.mxu0 0
        %1542 = vmatpush1.bf16.msra.mxu0 0
        %1543 = vmatprep.subr.bf16.mxu0 0
        %1544 = vmatpush1.bf16.msra.mxu0 0
        %1545 = vmatprep.subr.bf16.mxu0 0
        %1546 = vmatpush1.bf16.msra.mxu0 0
        %1547 = vmatprep.mubr.bf16.mxu0 0
        %1548 = vmatmul.mubr.bf16.gmra.mrb[0].mxu0 %v1513
        %v1549 = vpop.f32.mrb[0].mxu0
        %v1550 = vadd.f32 0.0, %v1549
        %v1551 = vpop.f32.mrb[0].mxu0
        %v1552 = vpop.f32.mrb[0].mxu0
        %v1553 = vadd.f32 0.0, %v1552
        %v1554 = vpop.f32.mrb[0].mxu0
        %1555 = vdwg.mxu0
        %v1560 = vunpack.c.l.b16 %v1271
        %v1561 = vunpack.c.l.b16 %v1272
        %v1562 = vunpack.c.l.b16 %v1273
        %v1563 = vunpack.c.l.b16 %v1274
        %v1564 = vpack.c.b16 %v1561, %v1560
        %v1565 = vpack.c.b16 %v1563, %v1562
        %v1569 = vsel %vm1066, %v1270, 0
        %1571 = vmatprep.subr.bf16.mxu0 0
        %1572 = vmatpush1.bf16.msra.mxu0 %v1564
        %1573 = vmatprep.subr.bf16.mxu0 0
        %1574 = vmatpush1.bf16.msra.mxu0 %v1565
        %1575 = vmatprep.subr.bf16.mxu0 0
        %1576 = vmatpush1.bf16.msra.mxu0 0
        %1577 = vmatprep.subr.bf16.mxu0 0
        %1578 = vmatpush1.bf16.msra.mxu0 0
        %1579 = vmatprep.subr.bf16.mxu0 0
        %1580 = vmatpush1.bf16.msra.mxu0 0
        %1581 = vmatprep.subr.bf16.mxu0 0
        %1582 = vmatpush1.bf16.msra.mxu0 0
        %1583 = vmatprep.subr.bf16.mxu0 0
        %1584 = vmatpush1.bf16.msra.mxu0 0
        %1585 = vmatprep.subr.bf16.mxu0 0
        %1586 = vmatpush1.bf16.msra.mxu0 0
        %1587 = vmatprep.subr.bf16.mxu0 0
        %1588 = vmatpush1.bf16.msra.mxu0 0
        %1589 = vmatprep.subr.bf16.mxu0 0
        %1590 = vmatpush1.bf16.msra.mxu0 0
        %1591 = vmatprep.subr.bf16.mxu0 0
        %1592 = vmatpush1.bf16.msra.mxu0 0
        %1593 = vmatprep.subr.bf16.mxu0 0
        %1594 = vmatpush1.bf16.msra.mxu0 0
        %1595 = vmatprep.subr.bf16.mxu0 0
        %1596 = vmatpush1.bf16.msra.mxu0 0
        %1597 = vmatprep.subr.bf16.mxu0 0
        %1598 = vmatpush1.bf16.msra.mxu0 0
        %1599 = vmatprep.subr.bf16.mxu0 0
        %1600 = vmatpush1.bf16.msra.mxu0 0
        %1601 = vmatprep.subr.bf16.mxu0 0
        %1602 = vmatpush1.bf16.msra.mxu0 0
        %1603 = vmatprep.mubr.bf16.mxu0 0
        %1604 = vmatmul.mubr.bf16.gmra.mrb[0].mxu0 %v1569
        %v1605 = vpop.f32.mrb[0].mxu0
        %v1606 = vadd.f32 %v1550, %v1605
        %v1607 = vpop.f32.mrb[0].mxu0
        %v1608 = vpop.f32.mrb[0].mxu0
        %v1609 = vadd.f32 %v1553, %v1608
        %v1610 = vpop.f32.mrb[0].mxu0
        %1611 = vdwg.mxu0
        %1612 = vrot.lane.b32.xlu0 %v1064, 64
        %v1613 = vpop.permute.xlu0 %1612
        %1614 = vrot.lane.b32.xlu0 %v1057, 64
        %v1615 = vpop.permute.xlu0 %1614
        %v1617 = vsel %vm1066, %v1613, 0
        %v1620 = vsel %vm1066, %v1615, 0
        %1622 = vmatprep.subr.bf16.mxu0 0
        %1623 = vmatpush1.bf16.xpose.msra.mxu0 %v1620
        %1624 = vmatprep.subr.bf16.mxu0 0
        %1625 = vmatpush1.bf16.xpose.msra.mxu0 0
        %1626 = vmatprep.subr.bf16.mxu0 0
        %1627 = vmatpush1.bf16.xpose.msra.mxu0 0
        %1628 = vmatprep.subr.bf16.mxu0 0
        %1629 = vmatpush1.bf16.xpose.msra.mxu0 0
        %1630 = vmatprep.subr.bf16.mxu0 0
        %1631 = vmatpush1.bf16.xpose.msra.mxu0 0
        %1632 = vmatprep.subr.bf16.mxu0 0
        %1633 = vmatpush1.bf16.xpose.msra.mxu0 0
        %1634 = vmatprep.subr.bf16.mxu0 0
        %1635 = vmatpush1.bf16.xpose.msra.mxu0 0
        %1636 = vmatprep.subr.bf16.mxu0 0
        %1637 = vmatpush1.bf16.xpose.msra.mxu0 0
        %1638 = vmatprep.subr.bf16.mxu0 0
        %1639 = vmatpush1.bf16.xpose.msra.mxu0 0
        %1640 = vmatprep.subr.bf16.mxu0 0
        %1641 = vmatpush1.bf16.xpose.msra.mxu0 0
        %1642 = vmatprep.subr.bf16.mxu0 0
        %1643 = vmatpush1.bf16.xpose.msra.mxu0 0
        %1644 = vmatprep.subr.bf16.mxu0 0
        %1645 = vmatpush1.bf16.xpose.msra.mxu0 0
        %1646 = vmatprep.subr.bf16.mxu0 0
        %1647 = vmatpush1.bf16.xpose.msra.mxu0 0
        %1648 = vmatprep.subr.bf16.mxu0 0
        %1649 = vmatpush1.bf16.xpose.msra.mxu0 0
        %1650 = vmatprep.subr.bf16.mxu0 0
        %1651 = vmatpush1.bf16.xpose.msra.mxu0 0
        %1652 = vmatprep.subr.bf16.mxu0 0
        %1653 = vmatpush1.bf16.xpose.msra.mxu0 0
        %1654 = vmatprep.mubr.bf16.mxu0 0
        %1655 = vmatmul.mubr.bf16.gmra.mrb[0].mxu0 %v1617
        %v1656 = vpop.f32.mrb[0].mxu0
        %v1657 = vadd.f32 0.0, %v1656
        %v1658 = vpop.f32.mrb[0].mxu0
        %v1659 = vpop.f32.mrb[0].mxu0
        %v1660 = vpop.f32.mrb[0].mxu0
        %1661 = vdwg.mxu0
        %1662 = vrot.lane.b32.xlu0 %v1065, 64
        %v1663 = vpop.permute.xlu0 %1662
        %1664 = vrot.lane.b32.xlu0 %v1058, 64
        %v1665 = vpop.permute.xlu0 %1664
        %v1667 = vsel %vm1066, %v1663, 0
        %v1670 = vsel %vm1066, %v1665, 0
        %1672 = vmatprep.subr.bf16.mxu0 0
        %1673 = vmatpush1.bf16.xpose.msra.mxu0 %v1670
        %1674 = vmatprep.subr.bf16.mxu0 0
        %1675 = vmatpush1.bf16.xpose.msra.mxu0 0
        %1676 = vmatprep.subr.bf16.mxu0 0
        %1677 = vmatpush1.bf16.xpose.msra.mxu0 0
        %1678 = vmatprep.subr.bf16.mxu0 0
        %1679 = vmatpush1.bf16.xpose.msra.mxu0 0
        %1680 = vmatprep.subr.bf16.mxu0 0
        %1681 = vmatpush1.bf16.xpose.msra.mxu0 0
        %1682 = vmatprep.subr.bf16.mxu0 0
        %1683 = vmatpush1.bf16.xpose.msra.mxu0 0
        %1684 = vmatprep.subr.bf16.mxu0 0
        %1685 = vmatpush1.bf16.xpose.msra.mxu0 0
        %1686 = vmatprep.subr.bf16.mxu0 0
        %1687 = vmatpush1.bf16.xpose.msra.mxu0 0
        %1688 = vmatprep.subr.bf16.mxu0 0
        %1689 = vmatpush1.bf16.xpose.msra.mxu0 0
        %1690 = vmatprep.subr.bf16.mxu0 0
        %1691 = vmatpush1.bf16.xpose.msra.mxu0 0
        %1692 = vmatprep.subr.bf16.mxu0 0
        %1693 = vmatpush1.bf16.xpose.msra.mxu0 0
        %1694 = vmatprep.subr.bf16.mxu0 0
        %1695 = vmatpush1.bf16.xpose.msra.mxu0 0
        %1696 = vmatprep.subr.bf16.mxu0 0
        %1697 = vmatpush1.bf16.xpose.msra.mxu0 0
        %1698 = vmatprep.subr.bf16.mxu0 0
        %1699 = vmatpush1.bf16.xpose.msra.mxu0 0
        %1700 = vmatprep.subr.bf16.mxu0 0
        %1701 = vmatpush1.bf16.xpose.msra.mxu0 0
        %1702 = vmatprep.subr.bf16.mxu0 0
        %1703 = vmatpush1.bf16.xpose.msra.mxu0 0
        %1704 = vmatprep.mubr.bf16.mxu0 0
        %1705 = vmatmul.mubr.bf16.gmra.mrb[0].mxu0 %v1667
        %v1706 = vpop.f32.mrb[0].mxu0
        %v1707 = vadd.f32 0.0, %v1706
        %v1708 = vpop.f32.mrb[0].mxu0
        %v1709 = vpop.f32.mrb[0].mxu0
        %v1710 = vpop.f32.mrb[0].mxu0
        %1711 = vdwg.mxu0
        %v1712 = vsel %vm1159, %v1657, -inf
        %1713 = vmax.xlane.f32.xlu0 %v1712
        %v1714 = vpop.xlane.xlu0 %1713
        %v1715 = vsel %vm1159, %v1707, -inf
        %1716 = vmax.xlane.f32.xlu0 %v1715
        %v1717 = vpop.xlane.xlu0 %1716
        %v1718 = vsub.f32 %v1657, %v1714
        %v1719 = vsub.f32 %v1707, %v1717
        %v1720 = vmul.f32 %v1718, 1.442695
        %v1721 = vpow.pop %v1720
        %v1722 = vmul.f32 %v1719, 1.442695
        %v1723 = vpow.pop %v1722
        %v1724 = vsel %vm1159, %v1721, 0.0
        %1725 = vadd.xlane.f32.xlu0 %v1724
        %v1726 = vpop.xlane.xlu0 %1725
        %v1727 = vsel %vm1159, %v1723, 0.0
        %1728 = vadd.xlane.f32.xlu0 %v1727
        %v1729 = vpop.xlane.xlu0 %1728
        %v1730 = vrcp.pop %v1726
        %v1731 = vrcp.pop %v1729
        %v1732 = vmul.f32 %v1721, %v1730
        %v1733 = vmul.f32 %v1723, %v1731
        %v1734 = vpack.c.bf16 %v1732, %v1732
        %v1735 = vpack.c.bf16 %v1733, %v1733
        %1736 = vrot.lane.b32.xlu0 %v1059, 64
        %v1737 = vpop.permute.xlu0 %1736
        %v1740 = vsel %vm1159, %v1734, 0
        %1742 = vmatprep.subr.bf16.mxu0 0
        %1743 = vmatpush1.bf16.msra.mxu0 %v1737
        %1744 = vmatprep.subr.bf16.mxu0 0
        %1745 = vmatpush1.bf16.msra.mxu0 0
        %1746 = vmatprep.subr.bf16.mxu0 0
        %1747 = vmatpush1.bf16.msra.mxu0 0
        %1748 = vmatprep.subr.bf16.mxu0 0
        %1749 = vmatpush1.bf16.msra.mxu0 0
        %1750 = vmatprep.subr.bf16.mxu0 0
        %1751 = vmatpush1.bf16.msra.mxu0 0
        %1752 = vmatprep.subr.bf16.mxu0 0
        %1753 = vmatpush1.bf16.msra.mxu0 0
        %1754 = vmatprep.subr.bf16.mxu0 0
        %1755 = vmatpush1.bf16.msra.mxu0 0
        %1756 = vmatprep.subr.bf16.mxu0 0
        %1757 = vmatpush1.bf16.msra.mxu0 0
        %1758 = vmatprep.subr.bf16.mxu0 0
        %1759 = vmatpush1.bf16.msra.mxu0 0
        %1760 = vmatprep.subr.bf16.mxu0 0
        %1761 = vmatpush1.bf16.msra.mxu0 0
        %1762 = vmatprep.subr.bf16.mxu0 0
        %1763 = vmatpush1.bf16.msra.mxu0 0
        %1764 = vmatprep.subr.bf16.mxu0 0
        %1765 = vmatpush1.bf16.msra.mxu0 0
        %1766 = vmatprep.subr.bf16.mxu0 0
        %1767 = vmatpush1.bf16.msra.mxu0 0
        %1768 = vmatprep.subr.bf16.mxu0 0
        %1769 = vmatpush1.bf16.msra.mxu0 0
        %1770 = vmatprep.subr.bf16.mxu0 0
        %1771 = vmatpush1.bf16.msra.mxu0 0
        %1772 = vmatprep.subr.bf16.mxu0 0
        %1773 = vmatpush1.bf16.msra.mxu0 0
        %1774 = vmatprep.mubr.bf16.mxu0 0
        %1775 = vmatmul.mubr.bf16.gmra.mrb[0].mxu0 %v1740
        %v1776 = vpop.f32.mrb[0].mxu0
        %v1777 = vadd.f32 0.0, %v1776
        %v1778 = vpop.f32.mrb[0].mxu0
        %v1779 = vpop.f32.mrb[0].mxu0
        %v1780 = vpop.f32.mrb[0].mxu0
        %1781 = vdwg.mxu0
        %1782 = vrot.lane.b32.xlu0 %v1060, 64
        %v1783 = vpop.permute.xlu0 %1782
        %v1786 = vsel %vm1159, %v1735, 0
        %1788 = vmatprep.subr.bf16.mxu0 0
        %1789 = vmatpush1.bf16.msra.mxu0 %v1783
        %1790 = vmatprep.subr.bf16.mxu0 0
        %1791 = vmatpush1.bf16.msra.mxu0 0
        %1792 = vmatprep.subr.bf16.mxu0 0
        %1793 = vmatpush1.bf16.msra.mxu0 0
        %1794 = vmatprep.subr.bf16.mxu0 0
        %1795 = vmatpush1.bf16.msra.mxu0 0
        %1796 = vmatprep.subr.bf16.mxu0 0
        %1797 = vmatpush1.bf16.msra.mxu0 0
        %1798 = vmatprep.subr.bf16.mxu0 0
        %1799 = vmatpush1.bf16.msra.mxu0 0
        %1800 = vmatprep.subr.bf16.mxu0 0
        %1801 = vmatpush1.bf16.msra.mxu0 0
        %1802 = vmatprep.subr.bf16.mxu0 0
        %1803 = vmatpush1.bf16.msra.mxu0 0
        %1804 = vmatprep.subr.bf16.mxu0 0
        %1805 = vmatpush1.bf16.msra.mxu0 0
        %1806 = vmatprep.subr.bf16.mxu0 0
        %1807 = vmatpush1.bf16.msra.mxu0 0
        %1808 = vmatprep.subr.bf16.mxu0 0
        %1809 = vmatpush1.bf16.msra.mxu0 0
        %1810 = vmatprep.subr.bf16.mxu0 0
        %1811 = vmatpush1.bf16.msra.mxu0 0
        %1812 = vmatprep.subr.bf16.mxu0 0
        %1813 = vmatpush1.bf16.msra.mxu0 0
        %1814 = vmatprep.subr.bf16.mxu0 0
        %1815 = vmatpush1.bf16.msra.mxu0 0
        %1816 = vmatprep.subr.bf16.mxu0 0
        %1817 = vmatpush1.bf16.msra.mxu0 0
        %1818 = vmatprep.subr.bf16.mxu0 0
        %1819 = vmatpush1.bf16.msra.mxu0 0
        %1820 = vmatprep.mubr.bf16.mxu0 0
        %1821 = vmatmul.mubr.bf16.gmra.mrb[0].mxu0 %v1786
        %v1822 = vpop.f32.mrb[0].mxu0
        %v1823 = vadd.f32 0.0, %v1822
        %v1824 = vpop.f32.mrb[0].mxu0
        %v1825 = vpop.f32.mrb[0].mxu0
        %v1826 = vpop.f32.mrb[0].mxu0
        %1827 = vdwg.mxu0
        %v1828 = vpack.c.bf16 %v1823, %v1777
        %v1829 = vld [vmem:[%s661 + $0x20] sm:$0xf]
        %v1830 = vld [vmem:[%s661 + $0x24] sm:$0xf]
        %v1831 = vld [vmem:[%s661 + $0x28] sm:$0xf]
        %v1832 = vld [vmem:[%s661 + $0x2c] sm:$0xf]
        %v1837 = vunpack.c.l.b16 %v1829
        %v1838 = vunpack.c.l.b16 %v1830
        %v1839 = vunpack.c.l.b16 %v1831
        %v1840 = vunpack.c.l.b16 %v1832
        %v1841 = vpack.c.b16 %v1838, %v1837
        %v1842 = vpack.c.b16 %v1840, %v1839
        %v1846 = vsel %vm1066, %v1828, 0
        %1848 = vmatprep.subr.bf16.mxu0 0
        %1849 = vmatpush1.bf16.msra.mxu0 %v1841
        %1850 = vmatprep.subr.bf16.mxu0 0
        %1851 = vmatpush1.bf16.msra.mxu0 %v1842
        %1852 = vmatprep.subr.bf16.mxu0 0
        %1853 = vmatpush1.bf16.msra.mxu0 0
        %1854 = vmatprep.subr.bf16.mxu0 0
        %1855 = vmatpush1.bf16.msra.mxu0 0
        %1856 = vmatprep.subr.bf16.mxu0 0
        %1857 = vmatpush1.bf16.msra.mxu0 0
        %1858 = vmatprep.subr.bf16.mxu0 0
        %1859 = vmatpush1.bf16.msra.mxu0 0
        %1860 = vmatprep.subr.bf16.mxu0 0
        %1861 = vmatpush1.bf16.msra.mxu0 0
        %1862 = vmatprep.subr.bf16.mxu0 0
        %1863 = vmatpush1.bf16.msra.mxu0 0
        %1864 = vmatprep.subr.bf16.mxu0 0
        %1865 = vmatpush1.bf16.msra.mxu0 0
        %1866 = vmatprep.subr.bf16.mxu0 0
        %1867 = vmatpush1.bf16.msra.mxu0 0
        %1868 = vmatprep.subr.bf16.mxu0 0
        %1869 = vmatpush1.bf16.msra.mxu0 0
        %1870 = vmatprep.subr.bf16.mxu0 0
        %1871 = vmatpush1.bf16.msra.mxu0 0
        %1872 = vmatprep.subr.bf16.mxu0 0
        %1873 = vmatpush1.bf16.msra.mxu0 0
        %1874 = vmatprep.subr.bf16.mxu0 0
        %1875 = vmatpush1.bf16.msra.mxu0 0
        %1876 = vmatprep.subr.bf16.mxu0 0
        %1877 = vmatpush1.bf16.msra.mxu0 0
        %1878 = vmatprep.subr.bf16.mxu0 0
        %1879 = vmatpush1.bf16.msra.mxu0 0
        %1880 = vmatprep.mubr.bf16.mxu0 0
        %1881 = vmatmul.mubr.bf16.gmra.mrb[0].mxu0 %v1846
        %v1882 = vpop.f32.mrb[0].mxu0
        %v1883 = vadd.f32 0.0, %v1882
        %v1884 = vpop.f32.mrb[0].mxu0
        %v1885 = vpop.f32.mrb[0].mxu0
        %v1886 = vadd.f32 0.0, %v1885
        %v1887 = vpop.f32.mrb[0].mxu0
        %1888 = vdwg.mxu0
        %v1889 = vadd.f32 %v1606, %v1883
        %v1890 = vadd.f32 %v1609, %v1886
        %1891 = vrot.lane.b32.xlu0 %v1064, 32
        %v1892 = vpop.permute.xlu0 %1891
        %1893 = vrot.lane.b32.xlu0 %v1057, 32
        %v1894 = vpop.permute.xlu0 %1893
        %v1896 = vsel %vm1066, %v1892, 0
        %v1899 = vsel %vm1066, %v1894, 0
        %1901 = vmatprep.subr.bf16.mxu0 0
        %1902 = vmatpush1.bf16.xpose.msra.mxu0 %v1899
        %1903 = vmatprep.subr.bf16.mxu0 0
        %1904 = vmatpush1.bf16.xpose.msra.mxu0 0
        %1905 = vmatprep.subr.bf16.mxu0 0
        %1906 = vmatpush1.bf16.xpose.msra.mxu0 0
        %1907 = vmatprep.subr.bf16.mxu0 0
        %1908 = vmatpush1.bf16.xpose.msra.mxu0 0
        %1909 = vmatprep.subr.bf16.mxu0 0
        %1910 = vmatpush1.bf16.xpose.msra.mxu0 0
        %1911 = vmatprep.subr.bf16.mxu0 0
        %1912 = vmatpush1.bf16.xpose.msra.mxu0 0
        %1913 = vmatprep.subr.bf16.mxu0 0
        %1914 = vmatpush1.bf16.xpose.msra.mxu0 0
        %1915 = vmatprep.subr.bf16.mxu0 0
        %1916 = vmatpush1.bf16.xpose.msra.mxu0 0
        %1917 = vmatprep.subr.bf16.mxu0 0
        %1918 = vmatpush1.bf16.xpose.msra.mxu0 0
        %1919 = vmatprep.subr.bf16.mxu0 0
        %1920 = vmatpush1.bf16.xpose.msra.mxu0 0
        %1921 = vmatprep.subr.bf16.mxu0 0
        %1922 = vmatpush1.bf16.xpose.msra.mxu0 0
        %1923 = vmatprep.subr.bf16.mxu0 0
        %1924 = vmatpush1.bf16.xpose.msra.mxu0 0
        %1925 = vmatprep.subr.bf16.mxu0 0
        %1926 = vmatpush1.bf16.xpose.msra.mxu0 0
        %1927 = vmatprep.subr.bf16.mxu0 0
        %1928 = vmatpush1.bf16.xpose.msra.mxu0 0
        %1929 = vmatprep.subr.bf16.mxu0 0
        %1930 = vmatpush1.bf16.xpose.msra.mxu0 0
        %1931 = vmatprep.subr.bf16.mxu0 0
        %1932 = vmatpush1.bf16.xpose.msra.mxu0 0
        %1933 = vmatprep.mubr.bf16.mxu0 0
        %1934 = vmatmul.mubr.bf16.gmra.mrb[0].mxu0 %v1896
        %v1935 = vpop.f32.mrb[0].mxu0
        %v1936 = vadd.f32 0.0, %v1935
        %v1937 = vpop.f32.mrb[0].mxu0
        %v1938 = vpop.f32.mrb[0].mxu0
        %v1939 = vpop.f32.mrb[0].mxu0
        %1940 = vdwg.mxu0
        %1941 = vrot.lane.b32.xlu0 %v1065, 32
        %v1942 = vpop.permute.xlu0 %1941
        %1943 = vrot.lane.b32.xlu0 %v1058, 32
        %v1944 = vpop.permute.xlu0 %1943
        %v1946 = vsel %vm1066, %v1942, 0
        %v1949 = vsel %vm1066, %v1944, 0
        %1951 = vmatprep.subr.bf16.mxu0 0
        %1952 = vmatpush1.bf16.xpose.msra.mxu0 %v1949
        %1953 = vmatprep.subr.bf16.mxu0 0
        %1954 = vmatpush1.bf16.xpose.msra.mxu0 0
        %1955 = vmatprep.subr.bf16.mxu0 0
        %1956 = vmatpush1.bf16.xpose.msra.mxu0 0
        %1957 = vmatprep.subr.bf16.mxu0 0
        %1958 = vmatpush1.bf16.xpose.msra.mxu0 0
        %1959 = vmatprep.subr.bf16.mxu0 0
        %1960 = vmatpush1.bf16.xpose.msra.mxu0 0
        %1961 = vmatprep.subr.bf16.mxu0 0
        %1962 = vmatpush1.bf16.xpose.msra.mxu0 0
        %1963 = vmatprep.subr.bf16.mxu0 0
        %1964 = vmatpush1.bf16.xpose.msra.mxu0 0
        %1965 = vmatprep.subr.bf16.mxu0 0
        %1966 = vmatpush1.bf16.xpose.msra.mxu0 0
        %1967 = vmatprep.subr.bf16.mxu0 0
        %1968 = vmatpush1.bf16.xpose.msra.mxu0 0
        %1969 = vmatprep.subr.bf16.mxu0 0
        %1970 = vmatpush1.bf16.xpose.msra.mxu0 0
        %1971 = vmatprep.subr.bf16.mxu0 0
        %1972 = vmatpush1.bf16.xpose.msra.mxu0 0
        %1973 = vmatprep.subr.bf16.mxu0 0
        %1974 = vmatpush1.bf16.xpose.msra.mxu0 0
        %1975 = vmatprep.subr.bf16.mxu0 0
        %1976 = vmatpush1.bf16.xpose.msra.mxu0 0
        %1977 = vmatprep.subr.bf16.mxu0 0
        %1978 = vmatpush1.bf16.xpose.msra.mxu0 0
        %1979 = vmatprep.subr.bf16.mxu0 0
        %1980 = vmatpush1.bf16.xpose.msra.mxu0 0
        %1981 = vmatprep.subr.bf16.mxu0 0
        %1982 = vmatpush1.bf16.xpose.msra.mxu0 0
        %1983 = vmatprep.mubr.bf16.mxu0 0
        %1984 = vmatmul.mubr.bf16.gmra.mrb[0].mxu0 %v1946
        %v1985 = vpop.f32.mrb[0].mxu0
        %v1986 = vadd.f32 0.0, %v1985
        %v1987 = vpop.f32.mrb[0].mxu0
        %v1988 = vpop.f32.mrb[0].mxu0
        %v1989 = vpop.f32.mrb[0].mxu0
        %1990 = vdwg.mxu0
        %v1991 = vsel %vm1159, %v1936, -inf
        %1992 = vmax.xlane.f32.xlu0 %v1991
        %v1993 = vpop.xlane.xlu0 %1992
        %v1994 = vsel %vm1159, %v1986, -inf
        %1995 = vmax.xlane.f32.xlu0 %v1994
        %v1996 = vpop.xlane.xlu0 %1995
        %v1997 = vsub.f32 %v1936, %v1993
        %v1998 = vsub.f32 %v1986, %v1996
        %v1999 = vmul.f32 %v1997, 1.442695
        %v2000 = vpow.pop %v1999
        %v2001 = vmul.f32 %v1998, 1.442695
        %v2002 = vpow.pop %v2001
        %v2003 = vsel %vm1159, %v2000, 0.0
        %2004 = vadd.xlane.f32.xlu0 %v2003
        %v2005 = vpop.xlane.xlu0 %2004
        %v2006 = vsel %vm1159, %v2002, 0.0
        %2007 = vadd.xlane.f32.xlu0 %v2006
        %v2008 = vpop.xlane.xlu0 %2007
        %v2009 = vrcp.pop %v2005
        %v2010 = vrcp.pop %v2008
        %v2011 = vmul.f32 %v2000, %v2009
        %v2012 = vmul.f32 %v2002, %v2010
        %v2013 = vpack.c.bf16 %v2011, %v2011
        %v2014 = vpack.c.bf16 %v2012, %v2012
        %2015 = vrot.lane.b32.xlu0 %v1059, 32
        %v2016 = vpop.permute.xlu0 %2015
        %v2019 = vsel %vm1159, %v2013, 0
        %2021 = vmatprep.subr.bf16.mxu0 0
        %2022 = vmatpush1.bf16.msra.mxu0 %v2016
        %2023 = vmatprep.subr.bf16.mxu0 0
        %2024 = vmatpush1.bf16.msra.mxu0 0
        %2025 = vmatprep.subr.bf16.mxu0 0
        %2026 = vmatpush1.bf16.msra.mxu0 0
        %2027 = vmatprep.subr.bf16.mxu0 0
        %2028 = vmatpush1.bf16.msra.mxu0 0
        %2029 = vmatprep.subr.bf16.mxu0 0
        %2030 = vmatpush1.bf16.msra.mxu0 0
        %2031 = vmatprep.subr.bf16.mxu0 0
        %2032 = vmatpush1.bf16.msra.mxu0 0
        %2033 = vmatprep.subr.bf16.mxu0 0
        %2034 = vmatpush1.bf16.msra.mxu0 0
        %2035 = vmatprep.subr.bf16.mxu0 0
        %2036 = vmatpush1.bf16.msra.mxu0 0
        %2037 = vmatprep.subr.bf16.mxu0 0
        %2038 = vmatpush1.bf16.msra.mxu0 0
        %2039 = vmatprep.subr.bf16.mxu0 0
        %2040 = vmatpush1.bf16.msra.mxu0 0
        %2041 = vmatprep.subr.bf16.mxu0 0
        %2042 = vmatpush1.bf16.msra.mxu0 0
        %2043 = vmatprep.subr.bf16.mxu0 0
        %2044 = vmatpush1.bf16.msra.mxu0 0
        %2045 = vmatprep.subr.bf16.mxu0 0
        %2046 = vmatpush1.bf16.msra.mxu0 0
        %2047 = vmatprep.subr.bf16.mxu0 0
        %2048 = vmatpush1.bf16.msra.mxu0 0
        %2049 = vmatprep.subr.bf16.mxu0 0
        %2050 = vmatpush1.bf16.msra.mxu0 0
        %2051 = vmatprep.subr.bf16.mxu0 0
        %2052 = vmatpush1.bf16.msra.mxu0 0
        %2053 = vmatprep.mubr.bf16.mxu0 0
        %2054 = vmatmul.mubr.bf16.gmra.mrb[0].mxu0 %v2019
        %v2055 = vpop.f32.mrb[0].mxu0
        %v2056 = vadd.f32 0.0, %v2055
        %v2057 = vpop.f32.mrb[0].mxu0
        %v2058 = vpop.f32.mrb[0].mxu0
        %v2059 = vpop.f32.mrb[0].mxu0
        %2060 = vdwg.mxu0
        %2061 = vrot.lane.b32.xlu0 %v1060, 32
        %v2062 = vpop.permute.xlu0 %2061
        %v2065 = vsel %vm1159, %v2014, 0
        %2067 = vmatprep.subr.bf16.mxu0 0
        %2068 = vmatpush1.bf16.msra.mxu0 %v2062
        %2069 = vmatprep.subr.bf16.mxu0 0
        %2070 = vmatpush1.bf16.msra.mxu0 0
        %2071 = vmatprep.subr.bf16.mxu0 0
        %2072 = vmatpush1.bf16.msra.mxu0 0
        %2073 = vmatprep.subr.bf16.mxu0 0
        %2074 = vmatpush1.bf16.msra.mxu0 0
        %2075 = vmatprep.subr.bf16.mxu0 0
        %2076 = vmatpush1.bf16.msra.mxu0 0
        %2077 = vmatprep.subr.bf16.mxu0 0
        %2078 = vmatpush1.bf16.msra.mxu0 0
        %2079 = vmatprep.subr.bf16.mxu0 0
        %2080 = vmatpush1.bf16.msra.mxu0 0
        %2081 = vmatprep.subr.bf16.mxu0 0
        %2082 = vmatpush1.bf16.msra.mxu0 0
        %2083 = vmatprep.subr.bf16.mxu0 0
        %2084 = vmatpush1.bf16.msra.mxu0 0
        %2085 = vmatprep.subr.bf16.mxu0 0
        %2086 = vmatpush1.bf16.msra.mxu0 0
        %2087 = vmatprep.subr.bf16.mxu0 0
        %2088 = vmatpush1.bf16.msra.mxu0 0
        %2089 = vmatprep.subr.bf16.mxu0 0
        %2090 = vmatpush1.bf16.msra.mxu0 0
        %2091 = vmatprep.subr.bf16.mxu0 0
        %2092 = vmatpush1.bf16.msra.mxu0 0
        %2093 = vmatprep.subr.bf16.mxu0 0
        %2094 = vmatpush1.bf16.msra.mxu0 0
        %2095 = vmatprep.subr.bf16.mxu0 0
        %2096 = vmatpush1.bf16.msra.mxu0 0
        %2097 = vmatprep.subr.bf16.mxu0 0
        %2098 = vmatpush1.bf16.msra.mxu0 0
        %2099 = vmatprep.mubr.bf16.mxu0 0
        %2100 = vmatmul.mubr.bf16.gmra.mrb[0].mxu0 %v2065
        %v2101 = vpop.f32.mrb[0].mxu0
        %v2102 = vadd.f32 0.0, %v2101
        %v2103 = vpop.f32.mrb[0].mxu0
        %v2104 = vpop.f32.mrb[0].mxu0
        %v2105 = vpop.f32.mrb[0].mxu0
        %2106 = vdwg.mxu0
        %v2107 = vpack.c.bf16 %v2102, %v2056
        %v2108 = vld [vmem:[%s661 + $0x30] sm:$0xf]
        %v2109 = vld [vmem:[%s661 + $0x34] sm:$0xf]
        %v2110 = vld [vmem:[%s661 + $0x38] sm:$0xf]
        %v2111 = vld [vmem:[%s661 + $0x3c] sm:$0xf]
        %v2116 = vunpack.c.l.b16 %v2108
        %v2117 = vunpack.c.l.b16 %v2109
        %v2118 = vunpack.c.l.b16 %v2110
        %v2119 = vunpack.c.l.b16 %v2111
        %v2120 = vpack.c.b16 %v2117, %v2116
        %v2121 = vpack.c.b16 %v2119, %v2118
        %v2125 = vsel %vm1066, %v2107, 0
        %2127 = vmatprep.subr.bf16.mxu0 0
        %2128 = vmatpush1.bf16.msra.mxu0 %v2120
        %2129 = vmatprep.subr.bf16.mxu0 0
        %2130 = vmatpush1.bf16.msra.mxu0 %v2121
        %2131 = vmatprep.subr.bf16.mxu0 0
        %2132 = vmatpush1.bf16.msra.mxu0 0
        %2133 = vmatprep.subr.bf16.mxu0 0
        %2134 = vmatpush1.bf16.msra.mxu0 0
        %2135 = vmatprep.subr.bf16.mxu0 0
        %2136 = vmatpush1.bf16.msra.mxu0 0
        %2137 = vmatprep.subr.bf16.mxu0 0
        %2138 = vmatpush1.bf16.msra.mxu0 0
        %2139 = vmatprep.subr.bf16.mxu0 0
        %2140 = vmatpush1.bf16.msra.mxu0 0
        %2141 = vmatprep.subr.bf16.mxu0 0
        %2142 = vmatpush1.bf16.msra.mxu0 0
        %2143 = vmatprep.subr.bf16.mxu0 0
        %2144 = vmatpush1.bf16.msra.mxu0 0
        %2145 = vmatprep.subr.bf16.mxu0 0
        %2146 = vmatpush1.bf16.msra.mxu0 0
        %2147 = vmatprep.subr.bf16.mxu0 0
        %2148 = vmatpush1.bf16.msra.mxu0 0
        %2149 = vmatprep.subr.bf16.mxu0 0
        %2150 = vmatpush1.bf16.msra.mxu0 0
        %2151 = vmatprep.subr.bf16.mxu0 0
        %2152 = vmatpush1.bf16.msra.mxu0 0
        %2153 = vmatprep.subr.bf16.mxu0 0
        %2154 = vmatpush1.bf16.msra.mxu0 0
        %2155 = vmatprep.subr.bf16.mxu0 0
        %2156 = vmatpush1.bf16.msra.mxu0 0
        %2157 = vmatprep.subr.bf16.mxu0 0
        %2158 = vmatpush1.bf16.msra.mxu0 0
        %2159 = vmatprep.mubr.bf16.mxu0 0
        %2160 = vmatmul.mubr.bf16.gmra.mrb[0].mxu0 %v2125
        %v2161 = vpop.f32.mrb[0].mxu0
        %v2162 = vadd.f32 0.0, %v2161
        %v2163 = vpop.f32.mrb[0].mxu0
        %v2164 = vpop.f32.mrb[0].mxu0
        %v2165 = vadd.f32 0.0, %v2164
        %v2166 = vpop.f32.mrb[0].mxu0
        %2167 = vdwg.mxu0
        %v2168 = vadd.f32 %v1889, %v2162
        %v2169 = vadd.f32 %v1890, %v2165
        %v2170 = vld [vmem:[%s764] sm:$0x1]
        %v2172 = vlaneseq
        %v2173 = vshrl.u32 %v2172, 7
        %v2174 = vsub.s32 0, %v2173
        %v2175 = vrot.slane %v2170, %v2174
        %v2177 = vadd.f32 %v2168, %v2175
        %v2178 = vadd.f32 %v2169, %v2175
        %v2179 = vadd.f32 %v793, %v2177
        %v2180 = vadd.f32 %v794, %v2178
        %v2181 = vld [vmem:[%s767] sm:$0x1]
        %v2182 = vld [vmem:[%s770] sm:$0x1]
        %2183 = vadd.xlane.f32.xlu0 %v2179
        %v2184 = vpop.xlane.xlu0 %2183
        %2185 = vadd.xlane.f32.xlu0 %v2180
        %v2186 = vpop.xlane.xlu0 %2185
        %v2187 = vrcp.pop 128.0
        %v2188 = vmul.f32 %v2184, %v2187
        %v2189 = vmul.f32 %v2186, %v2187
        %v2190 = vsub.f32 %v2179, %v2188
        %v2191 = vsub.f32 %v2180, %v2189
        %v2192 = vmul.f32 %v2190, %v2190
        %v2193 = vmul.f32 %v2191, %v2191
        %2194 = vadd.xlane.f32.xlu0 %v2192
        %v2195 = vpop.xlane.xlu0 %2194
        %2196 = vadd.xlane.f32.xlu0 %v2193
        %v2197 = vpop.xlane.xlu0 %2196
        %v2198 = vmul.f32 %v2195, %v2187
        %v2199 = vmul.f32 %v2197, %v2187
        %v2200 = vadd.f32 %v2198, 1e-05
        %v2201 = vadd.f32 %v2199, 1e-05
        %v2202 = vrsqrt.pop %v2200
        %v2203 = vrsqrt.pop %v2201
        %v2204 = vmul.f32 %v2190, %v2202
        %v2205 = vmul.f32 %v2191, %v2203
        %v2207 = vlaneseq
        %v2208 = vshrl.u32 %v2207, 7
        %v2209 = vsub.s32 0, %v2208
        %v2210 = vrot.slane %v2181, %v2209
        %v2212 = vmul.f32 %v2204, %v2210
        %v2213 = vmul.f32 %v2205, %v2210
        %v2215 = vlaneseq
        %v2216 = vshrl.u32 %v2215, 7
        %v2217 = vsub.s32 0, %v2216
        %v2218 = vrot.slane %v2182, %v2217
        %v2220 = vadd.f32 %v2212, %v2218
        %v2221 = vadd.f32 %v2213, %v2218
        %v2222 = vpack.c.bf16 %v2221, %v2220
        %v2223 = vld [vmem:[%s670] sm:$0xf]
        %v2224 = vld [vmem:[%s670 + $0x4] sm:$0xf]
        %v2225 = vld [vmem:[%s670 + $0x8] sm:$0xf]
        %v2226 = vld [vmem:[%s670 + $0xc] sm:$0xf]
        %v2227 = vld [vmem:[%s670 + $0x10] sm:$0xf]
        %v2228 = vld [vmem:[%s670 + $0x14] sm:$0xf]
        %v2229 = vld [vmem:[%s670 + $0x18] sm:$0xf]
        %v2230 = vld [vmem:[%s670 + $0x1c] sm:$0xf]
        %v2231 = vld [vmem:[%s670 + $0x20] sm:$0xf]
        %v2232 = vld [vmem:[%s670 + $0x24] sm:$0xf]
        %v2233 = vld [vmem:[%s670 + $0x28] sm:$0xf]
        %v2234 = vld [vmem:[%s670 + $0x2c] sm:$0xf]
        %v2235 = vld [vmem:[%s670 + $0x30] sm:$0xf]
        %v2236 = vld [vmem:[%s670 + $0x34] sm:$0xf]
        %v2237 = vld [vmem:[%s670 + $0x38] sm:$0xf]
        %v2238 = vld [vmem:[%s670 + $0x3c] sm:$0xf]
        %v2239 = vld [vmem:[%s773] sm:$0x1]
        %v2241 = vlaneseq
        %v2242 = vshrl.u32 %v2241, 7
        %v2243 = vsub.s32 0, %v2242
        %v2244 = vrot.slane %v2239, %v2243
        %v2262 = vunpack.c.l.b16 %v2223
        %v2263 = vunpack.c.l.b16 %v2224
        %v2264 = vunpack.c.l.b16 %v2225
        %v2265 = vunpack.c.l.b16 %v2226
        %v2266 = vunpack.c.l.b16 %v2227
        %v2267 = vunpack.c.l.b16 %v2228
        %v2268 = vunpack.c.l.b16 %v2229
        %v2269 = vunpack.c.l.b16 %v2230
        %v2270 = vunpack.c.l.b16 %v2231
        %v2271 = vunpack.c.l.b16 %v2232
        %v2272 = vunpack.c.l.b16 %v2233
        %v2273 = vunpack.c.l.b16 %v2234
        %v2274 = vunpack.c.l.b16 %v2235
        %v2275 = vunpack.c.l.b16 %v2236
        %v2276 = vunpack.c.l.b16 %v2237
        %v2277 = vunpack.c.l.b16 %v2238
        %v2278 = vpack.c.b16 %v2263, %v2262
        %v2279 = vpack.c.b16 %v2265, %v2264
        %v2280 = vpack.c.b16 %v2267, %v2266
        %v2281 = vpack.c.b16 %v2269, %v2268
        %v2282 = vpack.c.b16 %v2271, %v2270
        %v2283 = vpack.c.b16 %v2273, %v2272
        %v2284 = vpack.c.b16 %v2275, %v2274
        %v2285 = vpack.c.b16 %v2277, %v2276
        %2294 = vmatprep.subr.bf16.mxu0 0
        %2295 = vmatpush1.bf16.msra.mxu0 %v2278
        %2296 = vmatprep.subr.bf16.mxu0 0
        %2297 = vmatpush1.bf16.msra.mxu0 %v2279
        %2298 = vmatprep.subr.bf16.mxu0 0
        %2299 = vmatpush1.bf16.msra.mxu0 %v2280
        %2300 = vmatprep.subr.bf16.mxu0 0
        %2301 = vmatpush1.bf16.msra.mxu0 %v2281
        %2302 = vmatprep.subr.bf16.mxu0 0
        %2303 = vmatpush1.bf16.msra.mxu0 %v2282
        %2304 = vmatprep.subr.bf16.mxu0 0
        %2305 = vmatpush1.bf16.msra.mxu0 %v2283
        %2306 = vmatprep.subr.bf16.mxu0 0
        %2307 = vmatpush1.bf16.msra.mxu0 %v2284
        %2308 = vmatprep.subr.bf16.mxu0 0
        %2309 = vmatpush1.bf16.msra.mxu0 %v2285
        %2310 = vmatprep.subr.bf16.mxu0 0
        %2311 = vmatpush1.bf16.msra.mxu0 0
        %2312 = vmatprep.subr.bf16.mxu0 0
        %2313 = vmatpush1.bf16.msra.mxu0 0
        %2314 = vmatprep.subr.bf16.mxu0 0
        %2315 = vmatpush1.bf16.msra.mxu0 0
        %2316 = vmatprep.subr.bf16.mxu0 0
        %2317 = vmatpush1.bf16.msra.mxu0 0
        %2318 = vmatprep.subr.bf16.mxu0 0
        %2319 = vmatpush1.bf16.msra.mxu0 0
        %2320 = vmatprep.subr.bf16.mxu0 0
        %2321 = vmatpush1.bf16.msra.mxu0 0
        %2322 = vmatprep.subr.bf16.mxu0 0
        %2323 = vmatpush1.bf16.msra.mxu0 0
        %2324 = vmatprep.subr.bf16.mxu0 0
        %2325 = vmatpush1.bf16.msra.mxu0 0
        %2326 = vmatprep.mubr.bf16.mxu0 0
        %2327 = vmatmul.mubr.bf16.gmra.mrb[0].mxu0 %v2222
        %v2328 = vpop.f32.mrb[0].mxu0
        %v2329 = vadd.f32 %v2244, %v2328
        %v2330 = vpop.f32.mrb[0].mxu0
        %v2331 = vpop.f32.mrb[0].mxu0
        %v2332 = vadd.f32 %v2244, %v2331
        %v2333 = vpop.f32.mrb[0].mxu0
        %2334 = vdwg.mxu0
        %v2335 = vmax.f32 %v2329, 0.0
        %v2336 = vmax.f32 %v2332, 0.0
        %v2337 = vpack.c.bf16 %v2336, %v2335
        %v2338 = vld [vmem:[%s679] sm:$0xf]
        %v2339 = vld [vmem:[%s679 + $0x4] sm:$0xf]
        %v2340 = vld [vmem:[%s679 + $0x8] sm:$0xf]
        %v2341 = vld [vmem:[%s679 + $0xc] sm:$0xf]
        %v2342 = vld [vmem:[%s679 + $0x10] sm:$0xf]
        %v2343 = vld [vmem:[%s679 + $0x14] sm:$0xf]
        %v2344 = vld [vmem:[%s679 + $0x18] sm:$0xf]
        %v2345 = vld [vmem:[%s679 + $0x1c] sm:$0xf]
        %v2346 = vld [vmem:[%s679 + $0x20] sm:$0xf]
        %v2347 = vld [vmem:[%s679 + $0x24] sm:$0xf]
        %v2348 = vld [vmem:[%s679 + $0x28] sm:$0xf]
        %v2349 = vld [vmem:[%s679 + $0x2c] sm:$0xf]
        %v2350 = vld [vmem:[%s679 + $0x30] sm:$0xf]
        %v2351 = vld [vmem:[%s679 + $0x34] sm:$0xf]
        %v2352 = vld [vmem:[%s679 + $0x38] sm:$0xf]
        %v2353 = vld [vmem:[%s679 + $0x3c] sm:$0xf]
        %v2354 = vld [vmem:[%s776] sm:$0x1]
        %v2356 = vlaneseq
        %v2357 = vshrl.u32 %v2356, 7
        %v2358 = vsub.s32 0, %v2357
        %v2359 = vrot.slane %v2354, %v2358
        %v2377 = vunpack.c.l.b16 %v2338
        %v2378 = vunpack.c.l.b16 %v2339
        %v2379 = vunpack.c.l.b16 %v2340
        %v2380 = vunpack.c.l.b16 %v2341
        %v2381 = vunpack.c.l.b16 %v2342
        %v2382 = vunpack.c.l.b16 %v2343
        %v2383 = vunpack.c.l.b16 %v2344
        %v2384 = vunpack.c.l.b16 %v2345
        %v2385 = vunpack.c.l.b16 %v2346
        %v2386 = vunpack.c.l.b16 %v2347
        %v2387 = vunpack.c.l.b16 %v2348
        %v2388 = vunpack.c.l.b16 %v2349
        %v2389 = vunpack.c.l.b16 %v2350
        %v2390 = vunpack.c.l.b16 %v2351
        %v2391 = vunpack.c.l.b16 %v2352
        %v2392 = vunpack.c.l.b16 %v2353
        %v2393 = vpack.c.b16 %v2378, %v2377
        %v2394 = vpack.c.b16 %v2380, %v2379
        %v2395 = vpack.c.b16 %v2382, %v2381
        %v2396 = vpack.c.b16 %v2384, %v2383
        %v2397 = vpack.c.b16 %v2386, %v2385
        %v2398 = vpack.c.b16 %v2388, %v2387
        %v2399 = vpack.c.b16 %v2390, %v2389
        %v2400 = vpack.c.b16 %v2392, %v2391
        %2409 = vmatprep.subr.bf16.mxu0 0
        %2410 = vmatpush1.bf16.msra.mxu0 %v2393
        %2411 = vmatprep.subr.bf16.mxu0 0
        %2412 = vmatpush1.bf16.msra.mxu0 %v2394
        %2413 = vmatprep.subr.bf16.mxu0 0
        %2414 = vmatpush1.bf16.msra.mxu0 %v2395
        %2415 = vmatprep.subr.bf16.mxu0 0
        %2416 = vmatpush1.bf16.msra.mxu0 %v2396
        %2417 = vmatprep.subr.bf16.mxu0 0
        %2418 = vmatpush1.bf16.msra.mxu0 %v2397
        %2419 = vmatprep.subr.bf16.mxu0 0
        %2420 = vmatpush1.bf16.msra.mxu0 %v2398
        %2421 = vmatprep.subr.bf16.mxu0 0
        %2422 = vmatpush1.bf16.msra.mxu0 %v2399
        %2423 = vmatprep.subr.bf16.mxu0 0
        %2424 = vmatpush1.bf16.msra.mxu0 %v2400
        %2425 = vmatprep.subr.bf16.mxu0 0
        %2426 = vmatpush1.bf16.msra.mxu0 0
        %2427 = vmatprep.subr.bf16.mxu0 0
        %2428 = vmatpush1.bf16.msra.mxu0 0
        %2429 = vmatprep.subr.bf16.mxu0 0
        %2430 = vmatpush1.bf16.msra.mxu0 0
        %2431 = vmatprep.subr.bf16.mxu0 0
        %2432 = vmatpush1.bf16.msra.mxu0 0
        %2433 = vmatprep.subr.bf16.mxu0 0
        %2434 = vmatpush1.bf16.msra.mxu0 0
        %2435 = vmatprep.subr.bf16.mxu0 0
        %2436 = vmatpush1.bf16.msra.mxu0 0
        %2437 = vmatprep.subr.bf16.mxu0 0
        %2438 = vmatpush1.bf16.msra.mxu0 0
        %2439 = vmatprep.subr.bf16.mxu0 0
        %2440 = vmatpush1.bf16.msra.mxu0 0
        %2441 = vmatprep.mubr.bf16.mxu0 0
        %2442 = vmatmul.mubr.bf16.gmra.mrb[0].mxu0 %v2337
        %v2443 = vpop.f32.mrb[0].mxu0
        %v2444 = vadd.f32 %v2359, %v2443
        %v2445 = vpop.f32.mrb[0].mxu0
        %v2446 = vpop.f32.mrb[0].mxu0
        %v2447 = vadd.f32 %v2359, %v2446
        %v2448 = vpop.f32.mrb[0].mxu0
        %2449 = vdwg.mxu0
        %v2450 = vadd.f32 %v2220, %v2444
        %v2451 = vadd.f32 %v2221, %v2447
        %v2452 = vld [vmem:[%s779] sm:$0x1]
        %v2453 = vld [vmem:[%s782] sm:$0x1]
        %2454 = vadd.xlane.f32.xlu0 %v2450
        %v2455 = vpop.xlane.xlu0 %2454
        %2456 = vadd.xlane.f32.xlu0 %v2451
        %v2457 = vpop.xlane.xlu0 %2456
        %v2458 = vmul.f32 %v2455, %v2187
        %v2459 = vmul.f32 %v2457, %v2187
        %v2460 = vsub.f32 %v2450, %v2458
        %v2461 = vsub.f32 %v2451, %v2459
        %v2462 = vmul.f32 %v2460, %v2460
        %v2463 = vmul.f32 %v2461, %v2461
        %2464 = vadd.xlane.f32.xlu0 %v2462
        %v2465 = vpop.xlane.xlu0 %2464
        %2466 = vadd.xlane.f32.xlu0 %v2463
        %v2467 = vpop.xlane.xlu0 %2466
        %v2468 = vmul.f32 %v2465, %v2187
        %v2469 = vmul.f32 %v2467, %v2187
        %v2470 = vadd.f32 %v2468, 1e-05
        %v2471 = vadd.f32 %v2469, 1e-05
        %v2472 = vrsqrt.pop %v2470
        %v2473 = vrsqrt.pop %v2471
        %v2474 = vmul.f32 %v2460, %v2472
        %v2475 = vmul.f32 %v2461, %v2473
        %v2477 = vlaneseq
        %v2478 = vshrl.u32 %v2477, 7
        %v2479 = vsub.s32 0, %v2478
        %v2480 = vrot.slane %v2452, %v2479
        %v2482 = vmul.f32 %v2474, %v2480
        %v2483 = vmul.f32 %v2475, %v2480
        %v2485 = vlaneseq
        %v2486 = vshrl.u32 %v2485, 7
        %v2487 = vsub.s32 0, %v2486
        %v2488 = vrot.slane %v2453, %v2487
        %v2490 = vadd.f32 %v2482, %v2488
        %v2491 = vadd.f32 %v2483, %v2488
        %2492 = vst [vmem:[#allocation12] sm:$0xff] %v2490
        %2493 = vst [vmem:[#allocation12 + $0x8] sm:$0xff] %v2491
        // Predicated region
        $region109: #{tpu_custom_call.1} parent=75 // pred_check
          %p2494 = pneg %p422
        $region110: #{tpu_custom_call.1} parent=75 // pred_check_branch
          %2496 = sbr.rel (%p2494) target = $region112
        $region111: #{tpu_custom_call.1} parent=75 // pred_region
          %s2497 = smul.u32 2, %s32
          %s2499 = ssub.s32 256, 256
          %2500 = vsyncadd [#allocation4], %s2499
          %s2501 = smul.addr %s2497, 128
          %s2502 = scalar_lea.hbm %s14, %s2501
          %s2503 = sshll.u32 [#allocation12], 4
          %s2504 = int_to_ptr.vmem [resolvable:$true] %s2503
          %2509 = dma.vmem_to_hbm [thread:$0]  %s2504, 256, %s2502, [#allocation4], 128, 128, 8
        $region112: #{tpu_custom_call.1} parent=75 // pred_fallthru
          _
        // Predicated region
        $region113: #{tpu_custom_call.1} parent=75 // pred_check
          %p2510 = pneg %p422
        $region114: #{tpu_custom_call.1} parent=75 // pred_check_branch
          %2512 = sbr.rel (%p2510) target = $region116
        $region115: #{tpu_custom_call.1} parent=75 // pred_region
          %2513 = dma.done [#allocation4], 256
        $region116: #{tpu_custom_call.1} parent=75 // pred_fallthru
          _
      $region76: #{tpu_custom_call.1} parent=5 // pred_fallthru
        _
      %p2514 = scmp.le.s32.totalorder 2, %s23
      // Predicated region
      $region117: #{tpu_custom_call.1} parent=5 // pred_check
        %p2515 = pneg %p2514
      $region118: #{tpu_custom_call.1} parent=5 // pred_check_branch
        %2517 = sbr.rel (%p2515) target = $region120
      $region119: #{tpu_custom_call.1} parent=5 // pred_region
        %s2518 = ssub.s32 %s23, 2
      $region120: #{tpu_custom_call.1} parent=5 // pred_fallthru
        _
    $region6: #{tpu_custom_call.1} parent=1 // loop_footer
      %s27 = sadd.s32 1, %s23
    $region7: #{tpu_custom_call.1} parent=1 // loop_footer_branch
      %22 = sbr.rel target = $region3
    $region8: #{tpu_custom_call.1} parent=1 // loop_exit
      _
    %2519 = vsyncpa [#allocation3], 1
    %s2520 = scalar_lea.sflag [#allocation3], 1
    %2521 = vsyncpa %s2520, 1
    %2522 = vsyncpa [#allocation6], 1
    %2523 = vsyncpa [#allocation4], 1
    %s2524 = scalar_lea.sflag [#allocation4], 1
    %2525 = vsyncpa %s2524, 1

</llo_original>
